<compile_context>
chip_gen: v7x
topology: tpu7x:2x2x1
jax: 0.10.0
libtpu: 0.0.40
codegen_flags: <defaults>
</compile_context>

<pallas_src>
import functools

import jax
import jax.numpy as jnp
from jax import lax
from jax.experimental import pallas as pl
from jax.experimental.pallas import tpu as pltpu


# --------------------------------------------------------------------------
# Kernel: fused fwd+bwd LSTM recurrence over one time chunk.
# --------------------------------------------------------------------------
def _fused_bilstm_chunk_kernel(g_ref, wbd_ref, yf_ref, yb_ref, hT_ref,
                               h_scr, c_scr):
    """One time-chunk of the fused bidirectional recurrence.

    g_ref  : (Tc, B, 8H) gate pre-activations, columns gate-major/dir-minor
             [i_f, i_b, f_f, f_b, o_f, o_b, g_f, g_b]; the bwd stream is
             already time-reversed so both streams walk s = 0..Tc-1.
    wbd_ref: (2H, 8H) block-diagonal recurrent weights (resident all chunks).
    yf_ref : (Tc, B, H) forward hidden states (forward time order).
    yb_ref : (Tc, B, H) backward hidden states (forward time order, via a
             reversed chunk index_map on the out BlockSpec).
    hT_ref : (B, 2H) final [h_fwd | h_bwd] (written on the last chunk).
    h_scr, c_scr : (B, 2H) carried state across chunks.
    """
    c_idx = pl.program_id(0)
    nc = pl.num_programs(0)
    Tc = g_ref.shape[0]
    H2 = wbd_ref.shape[0]          # 2H  (fwd | bwd halves)
    H = H2 // 2
    H6 = 3 * H2                    # sigmoid gate columns (i, f, o)

    @pl.when(c_idx == 0)
    def _():
        h_scr[...] = jnp.zeros_like(h_scr)
        c_scr[...] = jnp.zeros_like(c_scr)

    h = h_scr[...]
    c = c_scr[...]

    # Static indices (Python loop) -> LLO can pipeline g loads / y stores.
    for s in range(Tc):
        gates = g_ref[s] + jnp.dot(h, wbd_ref[...],
                                   preferred_element_type=jnp.float32)
        sg = jax.nn.sigmoid(gates[:, :H6])       # one EUP pass: i,f,o (both dirs)
        gg = jnp.tanh(gates[:, H6:])             # one EUP pass: g    (both dirs)
        i_g = sg[:, 0 * H2:1 * H2]
        f_g = sg[:, 1 * H2:2 * H2]
        o_g = sg[:, 2 * H2:3 * H2]
        c = f_g * c + i_g * gg
        h = o_g * jnp.tanh(c)
        # NOTE: with H=32 these are sub-lane stores; at production sizes pick
        # H as a multiple of 128 for unmasked full-lane stores.
        yf_ref[s] = h[:, :H]                     # time  c*Tc + s
        yb_ref[Tc - 1 - s] = h[:, H:]            # time  T-1-(c*Tc+s)

    h_scr[...] = h
    c_scr[...] = c

    @pl.when(c_idx == nc - 1)
    def _():
        hT_ref[...] = h                          # == cat(h_fwd_final, h_bwd_final)


# --------------------------------------------------------------------------
# Wrapper helpers
# --------------------------------------------------------------------------
def _vmem_capacity_bytes():
    try:
        info = pltpu.get_tpu_info()
        cap = getattr(info, "vmem_capacity_bytes", None)
        if cap:
            return int(cap)
    except Exception:
        pass
    return 64 * 1024 * 1024        # conservative fallback (v7x per-TC)


def _pick_time_chunk(T, requested):
    target = requested if requested is not None else min(T, 64)
    target = max(1, min(int(target), T))
    for tc in range(target, 0, -1):
        if T % tc == 0:
            return tc
    return T


def bilstm_layer(x_parts, w_ih, w_bd, b, *, time_chunk=None):
    """One bidirectional LSTM layer.

    x_parts: list of (T, B, Dk) f32 arrays; the layer input is their feature
             concatenation (never materialized — consumed as matmul terms).
    w_ih   : (sum Dk, 8H) f32, columns = [fwd(i,f,o,g) | bwd(i,f,o,g)].
    w_bd   : (2H, 8H) f32 block-diagonal recurrent weights, columns
             gate-major/direction-minor.
    b      : (8H,) f32 = b_ih + b_hh, same column order as w_ih.
    Returns (y_fwd (T,B,H), y_bwd (T,B,H), hT (B,2H)), all forward time order.
    """
    T, B = x_parts[0].shape[:2]
    H2, H8 = w_bd.shape
    H = H2 // 2
    H4 = 4 * H

    # ---- Hoisted input projection: one fused matmul over all timesteps and
    # both directions, expressed as a sum over input parts. ----
    acc = None
    off = 0
    for xp in x_parts:
        dk = xp.shape[-1]
        part = jnp.dot(xp.reshape(T * B, dk), w_ih[off:off + dk],
                       preferred_element_type=jnp.float32)
        acc = part if acc is None else acc + part
        off += dk
    P = (acc + b).reshape(T, B, H8)

    # Pre-reverse the backward stream along T (pure XLA), then interleave
    # columns gate-major/direction-minor: [i_f,i_b,f_f,f_b,o_f,o_b,g_f,g_b].
    Pf = P[..., :H4].reshape(T, B, 4, H)
    Pb = P[..., H4:][::-1].reshape(T, B, 4, H)
    G = jnp.stack([Pf, Pb], axis=3).reshape(T, B, 2 * H4)

    Tc = _pick_time_chunk(T, time_chunk)
    nc = T // Tc

    # Generation-aware VMEM budget (double-buffered chunk blocks + residents).
    blk = 4 * (2 * Tc * B * H8          # G chunk (x2 buffers)
               + H2 * H8                # resident W_bd
               + 2 * 2 * Tc * B * H     # y_fwd / y_bwd chunks (x2 buffers)
               + B * H2                 # hT
               + 2 * B * H2)            # h/c scratch
    vmem_limit = int(min(max(4 * blk, 16 * 1024 * 1024),
                         0.75 * _vmem_capacity_bytes()))

    yf, yb, hT = pl.pallas_call(
        _fused_bilstm_chunk_kernel,
        out_shape=(
            jax.ShapeDtypeStruct((T, B, H), jnp.float32),
            jax.ShapeDtypeStruct((T, B, H), jnp.float32),
            jax.ShapeDtypeStruct((B, H2), jnp.float32),
        ),
        grid_spec=pltpu.PrefetchScalarGridSpec(
            num_scalar_prefetch=0,
            grid=(nc,),                                   # time chunks (carried state)
            in_specs=[
                pl.BlockSpec((Tc, B, H8), lambda c: (c, 0, 0)),
                pl.BlockSpec((H2, H8), lambda c: (0, 0)),
            ],
            out_specs=[
                pl.BlockSpec((Tc, B, H), lambda c: (c, 0, 0)),
                pl.BlockSpec((Tc, B, H), lambda c: (nc - 1 - c, 0, 0)),
                pl.BlockSpec((B, H2), lambda c: (0, 0)),
            ],
            scratch_shapes=[
                pltpu.VMEM((B, H2), jnp.float32),          # h state [fwd|bwd]
                pltpu.VMEM((B, H2), jnp.float32),          # c state [fwd|bwd]
            ],
        ),
        compiler_params=pltpu.CompilerParams(
            dimension_semantics=("arbitrary",),            # h/c carried across chunks
            vmem_limit_bytes=vmem_limit,
        ),
    )(G, w_bd)
    return yf, yb, hT


def init_bilstm_params(key, input_size, num_hiddens, num_layers):
    """nn.LSTM-equivalent parameters, stored in the kernel's fused layout.

    Per layer:
      w_ih : (d_in, 8H)  columns = [fwd(i,f,o,g) | bwd(i,f,o,g)]
      w_bd : (2H, 8H)    block-diagonal recurrent weights,
                         columns gate-major/direction-minor
      b    : (8H,)       b_ih + b_hh, same order as w_ih
    """
    H = num_hiddens
    k = 1.0 / jnp.sqrt(jnp.float32(H))
    params = []
    for layer in range(num_layers):
        d_in = input_size if layer == 0 else 2 * H
        key, k1, k2, k3, k4, k5, k6, k7, k8 = jax.random.split(key, 9)
        wih_f = jax.random.uniform(k1, (d_in, 4 * H), jnp.float32, -k, k)
        wih_b = jax.random.uniform(k2, (d_in, 4 * H), jnp.float32, -k, k)
        whh_f = jax.random.uniform(k3, (H, 4 * H), jnp.float32, -k, k)
        whh_b = jax.random.uniform(k4, (H, 4 * H), jnp.float32, -k, k)
        b_f = (jax.random.uniform(k5, (4 * H,), jnp.float32, -k, k)
               + jax.random.uniform(k6, (4 * H,), jnp.float32, -k, k))
        b_b = (jax.random.uniform(k7, (4 * H,), jnp.float32, -k, k)
               + jax.random.uniform(k8, (4 * H,), jnp.float32, -k, k))

        w_ih = jnp.concatenate([wih_f, wih_b], axis=1)           # (d_in, 8H)
        b = jnp.concatenate([b_f, b_b], axis=0)                  # (8H,)
        zf = jnp.zeros((H, 4, H), jnp.float32)
        top = jnp.stack([whh_f.reshape(H, 4, H), zf], axis=2)    # (H,4,2,H)
        bot = jnp.stack([zf, whh_b.reshape(H, 4, H)], axis=2)    # (H,4,2,H)
        w_bd = jnp.concatenate([top, bot], axis=0).reshape(2 * H, 8 * H)
        params.append({"w_ih": w_ih, "w_bd": w_bd, "b": b})
    return params


@functools.partial(jax.jit, static_argnames=("time_chunk",))
def bilstm_forward(x_btd, params, time_chunk=None):
    """Equivalent of BiLSTM.forward: relu(cat(h[-2], h[-1], -1)).

    x_btd: (B, T, reduction_out) f32, batch_first like the PyTorch module.
    """
    B0 = x_btd.shape[0]
    Bp = ((B0 + 7) // 8) * 8                       # sublane-align the batch
    if Bp != B0:
        x_btd = jnp.pad(x_btd, ((0, Bp - B0), (0, 0), (0, 0)))
    x_parts = [jnp.transpose(x_btd, (1, 0, 2))]    # time-major once, up front

    hT = None
    for lp in params:
        yf, yb, hT = bilstm_layer(x_parts, lp["w_ih"], lp["w_bd"], lp["b"],
                                  time_chunk=time_chunk)
        # Next-layer input = cat(yf, yb, -1): consumed as two matmul terms,
        # never materialized as an HBM concat.
        x_parts = [yf, yb]
        # TODO(synk): nn.LSTM applies dropout=0.2 between layers only in
        # training mode; eval-mode (deterministic) semantics implemented here.

    out = jax.nn.relu(hT)                          # hT == cat(h[-2], h[-1], -1)
    return out[:B0]


# --------------------------------------------------------------------------
# Pure-JAX reference (same parameter tensors) for a numerical sanity check.
# --------------------------------------------------------------------------
def _reference_bilstm(x_btd, params):
    x = jnp.transpose(x_btd, (1, 0, 2))
    hf = hb = None
    for lp in params:
        w_ih, w_bd, b = lp["w_ih"], lp["w_bd"], lp["b"]
        H8 = w_ih.shape[1]
        H = H8 // 8
        H4 = 4 * H
        wbd4 = w_bd.reshape(2 * H, 4, 2, H)
        whh_f = wbd4[:H, :, 0, :].reshape(H, H4)
        whh_b = wbd4[H:, :, 1, :].reshape(H, H4)

        def run(xs, wih, whh, bias):
            B = xs.shape[1]

            def step(carry, xt):
                h, c = carry
                g = xt @ wih + h @ whh + bias
                i = jax.nn.sigmoid(g[:, 0 * H:1 * H])
                f = jax.nn.sigmoid(g[:, 1 * H:2 * H])
                o = jax.nn.sigmoid(g[:, 2 * H:3 * H])
                gg = jnp.tanh(g[:, 3 * H:4 * H])
                c = f * c + i * gg
                h = o * jnp.tanh(c)
                return (h, c), h

            init = (jnp.zeros((B, H), jnp.float32), jnp.zeros((B, H), jnp.float32))
            (hT, _), ys = lax.scan(step, init, xs)
            return ys, hT

        yf, hf = run(x, w_ih[:, :H4], whh_f, b[:H4])
        yb_r, hb = run(x[::-1], w_ih[:, H4:], whh_b, b[H4:])
        x = jnp.concatenate([yf, yb_r[::-1]], axis=-1)
    return jax.nn.relu(jnp.concatenate([hf, hb], axis=-1))


if __name__ == "__main__":
    batch = 2
    seq = 8
    reduction_out = 16
    num_hiddens = 32
    num_layers = 2

    key = jax.random.PRNGKey(0)
    key_x, key_p = jax.random.split(key)
    x = jax.random.normal(key_x, (batch, seq, reduction_out), jnp.float32)
    params = init_bilstm_params(key_p, reduction_out, num_hiddens, num_layers)

    # time_chunk=4 -> 2 chunks: exercises the carried-h/c chunked path.
    out = bilstm_forward(x, params, time_chunk=4)
    out = jax.block_until_ready(out)
    assert out.shape == (batch, 2 * num_hiddens), out.shape

    ref = jax.block_until_ready(_reference_bilstm(x, params))
    assert jnp.allclose(out, ref, rtol=2e-3, atol=2e-3), float(
        jnp.max(jnp.abs(out - ref)))

    print("KERNEL_OK")
</pallas_src>

<mosaic_0001>
module attributes {stable_mosaic.version = 11 : i64} {
  func.func @_fused_bilstm_chunk_kernel(%arg0: i32, %arg1: memref<4x8x256xf32, #tpu.memory_space<vmem>>, %arg2: memref<64x256xf32, #tpu.memory_space<vmem>>, %arg3: memref<4x8x32xf32, #tpu.memory_space<vmem>>, %arg4: memref<4x8x32xf32, #tpu.memory_space<vmem>>, %arg5: memref<8x64xf32, #tpu.memory_space<vmem>>, %arg6: memref<8x64xf32, #tpu.memory_space<vmem>>, %arg7: memref<8x64xf32, #tpu.memory_space<vmem>>) attributes {dimension_semantics = [#tpu.dimension_semantics<arbitrary>], iteration_bounds = array<i64: 2>, scalar_prefetch = 0 : i64, scratch_operands = 2 : i64, tpu.core_type = #tpu.core_type<tc>, window_params = [{transform_indices = @transform_0, window_bounds = array<i64: 4, 8, 256>}, {pipeline_mode = #tpu.pipeline_mode<synchronous>, transform_indices = @transform_1, window_bounds = array<i64: 64, 256>}, {transform_indices = @transform_2, window_bounds = array<i64: 4, 8, 32>}, {transform_indices = @transform_3, window_bounds = array<i64: 4, 8, 32>}, {pipeline_mode = #tpu.pipeline_mode<synchronous>, transform_indices = @transform_4, window_bounds = array<i64: 8, 64>}]} {
    %c0_i32 = arith.constant 0 : i32
    %0 = arith.cmpi eq, %arg0, %c0_i32 : i32
    %1 = arith.extui %0 : i1 to i32
    %c0_i32_0 = arith.constant 0 : i32
    %2 = arith.cmpi ne, %1, %c0_i32_0 : i32
    scf.if %2 {
      %cst_57 = arith.constant 0.000000e+00 : f32
      %126 = vector.broadcast %cst_57 : f32 to vector<8x64xf32>
      %c0_58 = arith.constant 0 : index
      %c0_59 = arith.constant 0 : index
      %127 = vector.load %arg6[%c0_58, %c0_59] : memref<8x64xf32, #tpu.memory_space<vmem>>, vector<8x64xf32>
      tpu.vector_store %arg6[%c0_58, %c0_59], %126 {strides = array<i32>} : memref<8x64xf32, #tpu.memory_space<vmem>>, vector<8x64xf32>,
      %cst_60 = arith.constant 0.000000e+00 : f32
      %128 = vector.broadcast %cst_60 : f32 to vector<8x64xf32>
      %c0_61 = arith.constant 0 : index
      %c0_62 = arith.constant 0 : index
      %129 = vector.load %arg7[%c0_61, %c0_62] : memref<8x64xf32, #tpu.memory_space<vmem>>, vector<8x64xf32>
      tpu.vector_store %arg7[%c0_61, %c0_62], %128 {strides = array<i32>} : memref<8x64xf32, #tpu.memory_space<vmem>>, vector<8x64xf32>,
    } else {
    }
    %c0 = arith.constant 0 : index
    %c0_1 = arith.constant 0 : index
    %3 = vector.load %arg6[%c0, %c0_1] : memref<8x64xf32, #tpu.memory_space<vmem>>, vector<8x64xf32>
    %c0_2 = arith.constant 0 : index
    %c0_3 = arith.constant 0 : index
    %4 = vector.load %arg7[%c0_2, %c0_3] : memref<8x64xf32, #tpu.memory_space<vmem>>, vector<8x64xf32>
    %c0_4 = arith.constant 0 : index
    %c0_5 = arith.constant 0 : index
    %c0_6 = arith.constant 0 : index
    %5 = vector.load %arg1[%c0_4, %c0_5, %c0_6] : memref<4x8x256xf32, #tpu.memory_space<vmem>>, vector<1x8x256xf32>
    %6 = vector.shape_cast %5 : vector<1x8x256xf32> to vector<8x256xf32>
    %c0_7 = arith.constant 0 : index
    %c0_8 = arith.constant 0 : index
    %7 = vector.load %arg2[%c0_7, %c0_8] : memref<64x256xf32, #tpu.memory_space<vmem>>, vector<64x256xf32>
    %cst = arith.constant dense<0.000000e+00> : vector<8x256xf32>
    %8 = tpu.matmul %3, %7, %cst {dimension_numbers = #tpu.dot_dimension_numbers<[1], [0], [0], [1], [0, 0, 1, 1], [], []>} : vector<8x64xf32>, vector<64x256xf32>, vector<8x256xf32> -> vector<8x256xf32>
    %9 = arith.addf %6, %8 : vector<8x256xf32>
    %10 = vector.extract_strided_slice %9 {offsets = [0, 0], sizes = [8, 192], strides = [1, 1]} : vector<8x256xf32> to vector<8x192xf32>
    %11 = arith.negf %10 : vector<8x192xf32>
    %12 = math.exp %11 : vector<8x192xf32>
    %cst_9 = arith.constant 1.000000e+00 : f32
    %13 = vector.broadcast %cst_9 : f32 to vector<8x192xf32>
    %14 = arith.addf %13, %12 : vector<8x192xf32>
    %15 = arith.divf %13, %14 : vector<8x192xf32>
    %16 = vector.extract_strided_slice %9 {offsets = [0, 192], sizes = [8, 64], strides = [1, 1]} : vector<8x256xf32> to vector<8x64xf32>
    %17 = math.tanh %16 : vector<8x64xf32>
    %18 = vector.extract_strided_slice %15 {offsets = [0, 0], sizes = [8, 64], strides = [1, 1]} : vector<8x192xf32> to vector<8x64xf32>
    %19 = vector.extract_strided_slice %15 {offsets = [0, 64], sizes = [8, 64], strides = [1, 1]} : vector<8x192xf32> to vector<8x64xf32>
    %20 = vector.extract_strided_slice %15 {offsets = [0, 128], sizes = [8, 64], strides = [1, 1]} : vector<8x192xf32> to vector<8x64xf32>
    %21 = arith.mulf %19, %4 : vector<8x64xf32>
    %22 = arith.mulf %18, %17 : vector<8x64xf32>
    %23 = arith.addf %21, %22 : vector<8x64xf32>
    %24 = math.tanh %23 : vector<8x64xf32>
    %25 = arith.mulf %20, %24 : vector<8x64xf32>
    %26 = vector.extract_strided_slice %25 {offsets = [0, 0], sizes = [8, 32], strides = [1, 1]} : vector<8x64xf32> to vector<8x32xf32>
    %c0_10 = arith.constant 0 : index
    %c0_11 = arith.constant 0 : index
    %c0_12 = arith.constant 0 : index
    %27 = vector.load %arg3[%c0_10, %c0_11, %c0_12] : memref<4x8x32xf32, #tpu.memory_space<vmem>>, vector<1x8x32xf32>
    %28 = vector.shape_cast %27 : vector<1x8x32xf32> to vector<8x32xf32>
    %29 = vector.shape_cast %26 : vector<8x32xf32> to vector<1x8x32xf32>
    tpu.vector_store %arg3[%c0_10, %c0_11, %c0_12], %29 {strides = array<i32>} : memref<4x8x32xf32, #tpu.memory_space<vmem>>, vector<1x8x32xf32>,
    %30 = vector.extract_strided_slice %25 {offsets = [0, 32], sizes = [8, 32], strides = [1, 1]} : vector<8x64xf32> to vector<8x32xf32>
    %c3 = arith.constant 3 : index
    %c0_13 = arith.constant 0 : index
    %c0_14 = arith.constant 0 : index
    %31 = vector.load %arg4[%c3, %c0_13, %c0_14] : memref<4x8x32xf32, #tpu.memory_space<vmem>>, vector<1x8x32xf32>
    %32 = vector.shape_cast %31 : vector<1x8x32xf32> to vector<8x32xf32>
    %33 = vector.shape_cast %30 : vector<8x32xf32> to vector<1x8x32xf32>
    tpu.vector_store %arg4[%c3, %c0_13, %c0_14], %33 {strides = array<i32>} : memref<4x8x32xf32, #tpu.memory_space<vmem>>, vector<1x8x32xf32>,
    %c1 = arith.constant 1 : index
    %c0_15 = arith.constant 0 : index
    %c0_16 = arith.constant 0 : index
    %34 = vector.load %arg1[%c1, %c0_15, %c0_16] : memref<4x8x256xf32, #tpu.memory_space<vmem>>, vector<1x8x256xf32>
    %35 = vector.shape_cast %34 : vector<1x8x256xf32> to vector<8x256xf32>
    %c0_17 = arith.constant 0 : index
    %c0_18 = arith.constant 0 : index
    %36 = vector.load %arg2[%c0_17, %c0_18] : memref<64x256xf32, #tpu.memory_space<vmem>>, vector<64x256xf32>
    %cst_19 = arith.constant dense<0.000000e+00> : vector<8x256xf32>
    %37 = tpu.matmul %25, %36, %cst_19 {dimension_numbers = #tpu.dot_dimension_numbers<[1], [0], [0], [1], [0, 0, 1, 1], [], []>} : vector<8x64xf32>, vector<64x256xf32>, vector<8x256xf32> -> vector<8x256xf32>
    %38 = arith.addf %35, %37 : vector<8x256xf32>
    %39 = vector.extract_strided_slice %38 {offsets = [0, 0], sizes = [8, 192], strides = [1, 1]} : vector<8x256xf32> to vector<8x192xf32>
    %40 = arith.negf %39 : vector<8x192xf32>
    %41 = math.exp %40 : vector<8x192xf32>
    %cst_20 = arith.constant 1.000000e+00 : f32
    %42 = vector.broadcast %cst_20 : f32 to vector<8x192xf32>
    %43 = arith.addf %42, %41 : vector<8x192xf32>
    %44 = arith.divf %42, %43 : vector<8x192xf32>
    %45 = vector.extract_strided_slice %38 {offsets = [0, 192], sizes = [8, 64], strides = [1, 1]} : vector<8x256xf32> to vector<8x64xf32>
    %46 = math.tanh %45 : vector<8x64xf32>
    %47 = vector.extract_strided_slice %44 {offsets = [0, 0], sizes = [8, 64], strides = [1, 1]} : vector<8x192xf32> to vector<8x64xf32>
    %48 = vector.extract_strided_slice %44 {offsets = [0, 64], sizes = [8, 64], strides = [1, 1]} : vector<8x192xf32> to vector<8x64xf32>
    %49 = vector.extract_strided_slice %44 {offsets = [0, 128], sizes = [8, 64], strides = [1, 1]} : vector<8x192xf32> to vector<8x64xf32>
    %50 = arith.mulf %48, %23 : vector<8x64xf32>
    %51 = arith.mulf %47, %46 : vector<8x64xf32>
    %52 = arith.addf %50, %51 : vector<8x64xf32>
    %53 = math.tanh %52 : vector<8x64xf32>
    %54 = arith.mulf %49, %53 : vector<8x64xf32>
    %55 = vector.extract_strided_slice %54 {offsets = [0, 0], sizes = [8, 32], strides = [1, 1]} : vector<8x64xf32> to vector<8x32xf32>
    %c1_21 = arith.constant 1 : index
    %c0_22 = arith.constant 0 : index
    %c0_23 = arith.constant 0 : index
    %56 = vector.load %arg3[%c1_21, %c0_22, %c0_23] : memref<4x8x32xf32, #tpu.memory_space<vmem>>, vector<1x8x32xf32>
    %57 = vector.shape_cast %56 : vector<1x8x32xf32> to vector<8x32xf32>
    %58 = vector.shape_cast %55 : vector<8x32xf32> to vector<1x8x32xf32>
    tpu.vector_store %arg3[%c1_21, %c0_22, %c0_23], %58 {strides = array<i32>} : memref<4x8x32xf32, #tpu.memory_space<vmem>>, vector<1x8x32xf32>,
    %59 = vector.extract_strided_slice %54 {offsets = [0, 32], sizes = [8, 32], strides = [1, 1]} : vector<8x64xf32> to vector<8x32xf32>
    %c2 = arith.constant 2 : index
    %c0_24 = arith.constant 0 : index
    %c0_25 = arith.constant 0 : index
    %60 = vector.load %arg4[%c2, %c0_24, %c0_25] : memref<4x8x32xf32, #tpu.memory_space<vmem>>, vector<1x8x32xf32>
    %61 = vector.shape_cast %60 : vector<1x8x32xf32> to vector<8x32xf32>
    %62 = vector.shape_cast %59 : vector<8x32xf32> to vector<1x8x32xf32>
    tpu.vector_store %arg4[%c2, %c0_24, %c0_25], %62 {strides = array<i32>} : memref<4x8x32xf32, #tpu.memory_space<vmem>>, vector<1x8x32xf32>,
    %c2_26 = arith.constant 2 : index
    %c0_27 = arith.constant 0 : index
    %c0_28 = arith.constant 0 : index
    %63 = vector.load %arg1[%c2_26, %c0_27, %c0_28] : memref<4x8x256xf32, #tpu.memory_space<vmem>>, vector<1x8x256xf32>
    %64 = vector.shape_cast %63 : vector<1x8x256xf32> to vector<8x256xf32>
    %c0_29 = arith.constant 0 : index
    %c0_30 = arith.constant 0 : index
    %65 = vector.load %arg2[%c0_29, %c0_30] : memref<64x256xf32, #tpu.memory_space<vmem>>, vector<64x256xf32>
    %cst_31 = arith.constant dense<0.000000e+00> : vector<8x256xf32>
    %66 = tpu.matmul %54, %65, %cst_31 {dimension_numbers = #tpu.dot_dimension_numbers<[1], [0], [0], [1], [0, 0, 1, 1], [], []>} : vector<8x64xf32>, vector<64x256xf32>, vector<8x256xf32> -> vector<8x256xf32>
    %67 = arith.addf %64, %66 : vector<8x256xf32>
    %68 = vector.extract_strided_slice %67 {offsets = [0, 0], sizes = [8, 192], strides = [1, 1]} : vector<8x256xf32> to vector<8x192xf32>
    %69 = arith.negf %68 : vector<8x192xf32>
    %70 = math.exp %69 : vector<8x192xf32>
    %cst_32 = arith.constant 1.000000e+00 : f32
    %71 = vector.broadcast %cst_32 : f32 to vector<8x192xf32>
    %72 = arith.addf %71, %70 : vector<8x192xf32>
    %73 = arith.divf %71, %72 : vector<8x192xf32>
    %74 = vector.extract_strided_slice %67 {offsets = [0, 192], sizes = [8, 64], strides = [1, 1]} : vector<8x256xf32> to vector<8x64xf32>
    %75 = math.tanh %74 : vector<8x64xf32>
    %76 = vector.extract_strided_slice %73 {offsets = [0, 0], sizes = [8, 64], strides = [1, 1]} : vector<8x192xf32> to vector<8x64xf32>
    %77 = vector.extract_strided_slice %73 {offsets = [0, 64], sizes = [8, 64], strides = [1, 1]} : vector<8x192xf32> to vector<8x64xf32>
    %78 = vector.extract_strided_slice %73 {offsets = [0, 128], sizes = [8, 64], strides = [1, 1]} : vector<8x192xf32> to vector<8x64xf32>
    %79 = arith.mulf %77, %52 : vector<8x64xf32>
    %80 = arith.mulf %76, %75 : vector<8x64xf32>
    %81 = arith.addf %79, %80 : vector<8x64xf32>
    %82 = math.tanh %81 : vector<8x64xf32>
    %83 = arith.mulf %78, %82 : vector<8x64xf32>
    %84 = vector.extract_strided_slice %83 {offsets = [0, 0], sizes = [8, 32], strides = [1, 1]} : vector<8x64xf32> to vector<8x32xf32>
    %c2_33 = arith.constant 2 : index
    %c0_34 = arith.constant 0 : index
    %c0_35 = arith.constant 0 : index
    %85 = vector.load %arg3[%c2_33, %c0_34, %c0_35] : memref<4x8x32xf32, #tpu.memory_space<vmem>>, vector<1x8x32xf32>
    %86 = vector.shape_cast %85 : vector<1x8x32xf32> to vector<8x32xf32>
    %87 = vector.shape_cast %84 : vector<8x32xf32> to vector<1x8x32xf32>
    tpu.vector_store %arg3[%c2_33, %c0_34, %c0_35], %87 {strides = array<i32>} : memref<4x8x32xf32, #tpu.memory_space<vmem>>, vector<1x8x32xf32>,
    %88 = vector.extract_strided_slice %83 {offsets = [0, 32], sizes = [8, 32], strides = [1, 1]} : vector<8x64xf32> to vector<8x32xf32>
    %c1_36 = arith.constant 1 : index
    %c0_37 = arith.constant 0 : index
    %c0_38 = arith.constant 0 : index
    %89 = vector.load %arg4[%c1_36, %c0_37, %c0_38] : memref<4x8x32xf32, #tpu.memory_space<vmem>>, vector<1x8x32xf32>
    %90 = vector.shape_cast %89 : vector<1x8x32xf32> to vector<8x32xf32>
    %91 = vector.shape_cast %88 : vector<8x32xf32> to vector<1x8x32xf32>
    tpu.vector_store %arg4[%c1_36, %c0_37, %c0_38], %91 {strides = array<i32>} : memref<4x8x32xf32, #tpu.memory_space<vmem>>, vector<1x8x32xf32>,
    %c3_39 = arith.constant 3 : index
    %c0_40 = arith.constant 0 : index
    %c0_41 = arith.constant 0 : index
    %92 = vector.load %arg1[%c3_39, %c0_40, %c0_41] : memref<4x8x256xf32, #tpu.memory_space<vmem>>, vector<1x8x256xf32>
    %93 = vector.shape_cast %92 : vector<1x8x256xf32> to vector<8x256xf32>
    %c0_42 = arith.constant 0 : index
    %c0_43 = arith.constant 0 : index
    %94 = vector.load %arg2[%c0_42, %c0_43] : memref<64x256xf32, #tpu.memory_space<vmem>>, vector<64x256xf32>
    %cst_44 = arith.constant dense<0.000000e+00> : vector<8x256xf32>
    %95 = tpu.matmul %83, %94, %cst_44 {dimension_numbers = #tpu.dot_dimension_numbers<[1], [0], [0], [1], [0, 0, 1, 1], [], []>} : vector<8x64xf32>, vector<64x256xf32>, vector<8x256xf32> -> vector<8x256xf32>
    %96 = arith.addf %93, %95 : vector<8x256xf32>
    %97 = vector.extract_strided_slice %96 {offsets = [0, 0], sizes = [8, 192], strides = [1, 1]} : vector<8x256xf32> to vector<8x192xf32>
    %98 = arith.negf %97 : vector<8x192xf32>
    %99 = math.exp %98 : vector<8x192xf32>
    %cst_45 = arith.constant 1.000000e+00 : f32
    %100 = vector.broadcast %cst_45 : f32 to vector<8x192xf32>
    %101 = arith.addf %100, %99 : vector<8x192xf32>
    %102 = arith.divf %100, %101 : vector<8x192xf32>
    %103 = vector.extract_strided_slice %96 {offsets = [0, 192], sizes = [8, 64], strides = [1, 1]} : vector<8x256xf32> to vector<8x64xf32>
    %104 = math.tanh %103 : vector<8x64xf32>
    %105 = vector.extract_strided_slice %102 {offsets = [0, 0], sizes = [8, 64], strides = [1, 1]} : vector<8x192xf32> to vector<8x64xf32>
    %106 = vector.extract_strided_slice %102 {offsets = [0, 64], sizes = [8, 64], strides = [1, 1]} : vector<8x192xf32> to vector<8x64xf32>
    %107 = vector.extract_strided_slice %102 {offsets = [0, 128], sizes = [8, 64], strides = [1, 1]} : vector<8x192xf32> to vector<8x64xf32>
    %108 = arith.mulf %106, %81 : vector<8x64xf32>
    %109 = arith.mulf %105, %104 : vector<8x64xf32>
    %110 = arith.addf %108, %109 : vector<8x64xf32>
    %111 = math.tanh %110 : vector<8x64xf32>
    %112 = arith.mulf %107, %111 : vector<8x64xf32>
    %113 = vector.extract_strided_slice %112 {offsets = [0, 0], sizes = [8, 32], strides = [1, 1]} : vector<8x64xf32> to vector<8x32xf32>
    %c3_46 = arith.constant 3 : index
    %c0_47 = arith.constant 0 : index
    %c0_48 = arith.constant 0 : index
    %114 = vector.load %arg3[%c3_46, %c0_47, %c0_48] : memref<4x8x32xf32, #tpu.memory_space<vmem>>, vector<1x8x32xf32>
    %115 = vector.shape_cast %114 : vector<1x8x32xf32> to vector<8x32xf32>
    %116 = vector.shape_cast %113 : vector<8x32xf32> to vector<1x8x32xf32>
    tpu.vector_store %arg3[%c3_46, %c0_47, %c0_48], %116 {strides = array<i32>} : memref<4x8x32xf32, #tpu.memory_space<vmem>>, vector<1x8x32xf32>,
    %117 = vector.extract_strided_slice %112 {offsets = [0, 32], sizes = [8, 32], strides = [1, 1]} : vector<8x64xf32> to vector<8x32xf32>
    %c0_49 = arith.constant 0 : index
    %c0_50 = arith.constant 0 : index
    %c0_51 = arith.constant 0 : index
    %118 = vector.load %arg4[%c0_49, %c0_50, %c0_51] : memref<4x8x32xf32, #tpu.memory_space<vmem>>, vector<1x8x32xf32>
    %119 = vector.shape_cast %118 : vector<1x8x32xf32> to vector<8x32xf32>
    %120 = vector.shape_cast %117 : vector<8x32xf32> to vector<1x8x32xf32>
    tpu.vector_store %arg4[%c0_49, %c0_50, %c0_51], %120 {strides = array<i32>} : memref<4x8x32xf32, #tpu.memory_space<vmem>>, vector<1x8x32xf32>,
    %c0_52 = arith.constant 0 : index
    %c0_53 = arith.constant 0 : index
    %121 = vector.load %arg6[%c0_52, %c0_53] : memref<8x64xf32, #tpu.memory_space<vmem>>, vector<8x64xf32>
    tpu.vector_store %arg6[%c0_52, %c0_53], %112 {strides = array<i32>} : memref<8x64xf32, #tpu.memory_space<vmem>>, vector<8x64xf32>,
    %c0_54 = arith.constant 0 : index
    %c0_55 = arith.constant 0 : index
    %122 = vector.load %arg7[%c0_54, %c0_55] : memref<8x64xf32, #tpu.memory_space<vmem>>, vector<8x64xf32>
    tpu.vector_store %arg7[%c0_54, %c0_55], %110 {strides = array<i32>} : memref<8x64xf32, #tpu.memory_space<vmem>>, vector<8x64xf32>,
    %c1_i32 = arith.constant 1 : i32
    %123 = arith.cmpi eq, %arg0, %c1_i32 : i32
    %124 = arith.extui %123 : i1 to i32
    %c0_i32_56 = arith.constant 0 : i32
    %125 = arith.cmpi ne, %124, %c0_i32_56 : i32
    scf.if %125 {
      %c0_57 = arith.constant 0 : index
      %c0_58 = arith.constant 0 : index
      %126 = vector.load %arg5[%c0_57, %c0_58] : memref<8x64xf32, #tpu.memory_space<vmem>>, vector<8x64xf32>
      tpu.vector_store %arg5[%c0_57, %c0_58], %112 {strides = array<i32>} : memref<8x64xf32, #tpu.memory_space<vmem>>, vector<8x64xf32>,
    } else {
    }
    return
  }
  func.func @transform_0(%arg0: i32) -> (i32, i32, i32) {
    %c0_i32 = arith.constant 0 : i32
    %c0_i32_0 = arith.constant 0 : i32
    %c0_i32_1 = arith.constant 0 : i32
    return %arg0, %c0_i32, %c0_i32_0 : i32, i32, i32
  }
  func.func @transform_1(%arg0: i32) -> (i32, i32) {
    %c0_i32 = arith.constant 0 : i32
    %c0_i32_0 = arith.constant 0 : i32
    %c0_i32_1 = arith.constant 0 : i32
    return %c0_i32, %c0_i32_0 : i32, i32
  }
  func.func @transform_2(%arg0: i32) -> (i32, i32, i32) {
    %c0_i32 = arith.constant 0 : i32
    %c0_i32_0 = arith.constant 0 : i32
    %c0_i32_1 = arith.constant 0 : i32
    return %arg0, %c0_i32, %c0_i32_0 : i32, i32, i32
  }
  func.func @transform_3(%arg0: i32) -> (i32, i32, i32) {
    %c1_i32 = arith.constant 1 : i32
    %0 = arith.subi %c1_i32, %arg0 : i32
    %c0_i32 = arith.constant 0 : i32
    %c0_i32_0 = arith.constant 0 : i32
    %c0_i32_1 = arith.constant 0 : i32
    return %0, %c0_i32, %c0_i32_0 : i32, i32, i32
  }
  func.func @transform_4(%arg0: i32) -> (i32, i32) {
    %c0_i32 = arith.constant 0 : i32
    %c0_i32_0 = arith.constant 0 : i32
    %c0_i32_1 = arith.constant 0 : i32
    return %c0_i32, %c0_i32_0 : i32, i32
  }
}

module attributes {stable_mosaic.version = 11 : i64} {
  func.func @_fused_bilstm_chunk_kernel(%arg0: i32, %arg1: memref<4x8x256xf32, #tpu.memory_space<vmem>>, %arg2: memref<64x256xf32, #tpu.memory_space<vmem>>, %arg3: memref<4x8x32xf32, #tpu.memory_space<vmem>>, %arg4: memref<4x8x32xf32, #tpu.memory_space<vmem>>, %arg5: memref<8x64xf32, #tpu.memory_space<vmem>>, %arg6: memref<8x64xf32, #tpu.memory_space<vmem>>, %arg7: memref<8x64xf32, #tpu.memory_space<vmem>>) attributes {dimension_semantics = [#tpu.dimension_semantics<arbitrary>], iteration_bounds = array<i64: 2>, scalar_prefetch = 0 : i64, scratch_operands = 2 : i64, tpu.core_type = #tpu.core_type<tc>, window_params = [{transform_indices = @transform_0, window_bounds = array<i64: 4, 8, 256>}, {pipeline_mode = #tpu.pipeline_mode<synchronous>, transform_indices = @transform_1, window_bounds = array<i64: 64, 256>}, {transform_indices = @transform_2, window_bounds = array<i64: 4, 8, 32>}, {transform_indices = @transform_3, window_bounds = array<i64: 4, 8, 32>}, {pipeline_mode = #tpu.pipeline_mode<synchronous>, transform_indices = @transform_4, window_bounds = array<i64: 8, 64>}]} {
    %c0_i32 = arith.constant 0 : i32
    %0 = arith.cmpi eq, %arg0, %c0_i32 : i32
    %1 = arith.extui %0 : i1 to i32
    %c0_i32_0 = arith.constant 0 : i32
    %2 = arith.cmpi ne, %1, %c0_i32_0 : i32
    scf.if %2 {
      %cst_57 = arith.constant 0.000000e+00 : f32
      %126 = vector.broadcast %cst_57 : f32 to vector<8x64xf32>
      %c0_58 = arith.constant 0 : index
      %c0_59 = arith.constant 0 : index
      %127 = vector.load %arg6[%c0_58, %c0_59] : memref<8x64xf32, #tpu.memory_space<vmem>>, vector<8x64xf32>
      tpu.vector_store %arg6[%c0_58, %c0_59], %126 {strides = array<i32>} : memref<8x64xf32, #tpu.memory_space<vmem>>, vector<8x64xf32>,
      %cst_60 = arith.constant 0.000000e+00 : f32
      %128 = vector.broadcast %cst_60 : f32 to vector<8x64xf32>
      %c0_61 = arith.constant 0 : index
      %c0_62 = arith.constant 0 : index
      %129 = vector.load %arg7[%c0_61, %c0_62] : memref<8x64xf32, #tpu.memory_space<vmem>>, vector<8x64xf32>
      tpu.vector_store %arg7[%c0_61, %c0_62], %128 {strides = array<i32>} : memref<8x64xf32, #tpu.memory_space<vmem>>, vector<8x64xf32>,
    } else {
    }
    %c0 = arith.constant 0 : index
    %c0_1 = arith.constant 0 : index
    %3 = vector.load %arg6[%c0, %c0_1] : memref<8x64xf32, #tpu.memory_space<vmem>>, vector<8x64xf32>
    %c0_2 = arith.constant 0 : index
    %c0_3 = arith.constant 0 : index
    %4 = vector.load %arg7[%c0_2, %c0_3] : memref<8x64xf32, #tpu.memory_space<vmem>>, vector<8x64xf32>
    %c0_4 = arith.constant 0 : index
    %c0_5 = arith.constant 0 : index
    %c0_6 = arith.constant 0 : index
    %5 = vector.load %arg1[%c0_4, %c0_5, %c0_6] : memref<4x8x256xf32, #tpu.memory_space<vmem>>, vector<1x8x256xf32>
    %6 = vector.shape_cast %5 : vector<1x8x256xf32> to vector<8x256xf32>
    %c0_7 = arith.constant 0 : index
    %c0_8 = arith.constant 0 : index
    %7 = vector.load %arg2[%c0_7, %c0_8] : memref<64x256xf32, #tpu.memory_space<vmem>>, vector<64x256xf32>
    %cst = arith.constant dense<0.000000e+00> : vector<8x256xf32>
    %8 = tpu.matmul %3, %7, %cst {dimension_numbers = #tpu.dot_dimension_numbers<[1], [0], [0], [1], [0, 0, 1, 1], [], []>} : vector<8x64xf32>, vector<64x256xf32>, vector<8x256xf32> -> vector<8x256xf32>
    %9 = arith.addf %6, %8 : vector<8x256xf32>
    %10 = vector.extract_strided_slice %9 {offsets = [0, 0], sizes = [8, 192], strides = [1, 1]} : vector<8x256xf32> to vector<8x192xf32>
    %11 = arith.negf %10 : vector<8x192xf32>
    %12 = math.exp %11 : vector<8x192xf32>
    %cst_9 = arith.constant 1.000000e+00 : f32
    %13 = vector.broadcast %cst_9 : f32 to vector<8x192xf32>
    %14 = arith.addf %13, %12 : vector<8x192xf32>
    %15 = arith.divf %13, %14 : vector<8x192xf32>
    %16 = vector.extract_strided_slice %9 {offsets = [0, 192], sizes = [8, 64], strides = [1, 1]} : vector<8x256xf32> to vector<8x64xf32>
    %17 = math.tanh %16 : vector<8x64xf32>
    %18 = vector.extract_strided_slice %15 {offsets = [0, 0], sizes = [8, 64], strides = [1, 1]} : vector<8x192xf32> to vector<8x64xf32>
    %19 = vector.extract_strided_slice %15 {offsets = [0, 64], sizes = [8, 64], strides = [1, 1]} : vector<8x192xf32> to vector<8x64xf32>
    %20 = vector.extract_strided_slice %15 {offsets = [0, 128], sizes = [8, 64], strides = [1, 1]} : vector<8x192xf32> to vector<8x64xf32>
    %21 = arith.mulf %19, %4 : vector<8x64xf32>
    %22 = arith.mulf %18, %17 : vector<8x64xf32>
    %23 = arith.addf %21, %22 : vector<8x64xf32>
    %24 = math.tanh %23 : vector<8x64xf32>
    %25 = arith.mulf %20, %24 : vector<8x64xf32>
    %26 = vector.extract_strided_slice %25 {offsets = [0, 0], sizes = [8, 32], strides = [1, 1]} : vector<8x64xf32> to vector<8x32xf32>
    %c0_10 = arith.constant 0 : index
    %c0_11 = arith.constant 0 : index
    %c0_12 = arith.constant 0 : index
    %27 = vector.load %arg3[%c0_10, %c0_11, %c0_12] : memref<4x8x32xf32, #tpu.memory_space<vmem>>, vector<1x8x32xf32>
    %28 = vector.shape_cast %27 : vector<1x8x32xf32> to vector<8x32xf32>
    %29 = vector.shape_cast %26 : vector<8x32xf32> to vector<1x8x32xf32>
    tpu.vector_store %arg3[%c0_10, %c0_11, %c0_12], %29 {strides = array<i32>} : memref<4x8x32xf32, #tpu.memory_space<vmem>>, vector<1x8x32xf32>,
    %30 = vector.extract_strided_slice %25 {offsets = [0, 32], sizes = [8, 32], strides = [1, 1]} : vector<8x64xf32> to vector<8x32xf32>
    %c3 = arith.constant 3 : index
    %c0_13 = arith.constant 0 : index
    %c0_14 = arith.constant 0 : index
    %31 = vector.load %arg4[%c3, %c0_13, %c0_14] : memref<4x8x32xf32, #tpu.memory_space<vmem>>, vector<1x8x32xf32>
    %32 = vector.shape_cast %31 : vector<1x8x32xf32> to vector<8x32xf32>
    %33 = vector.shape_cast %30 : vector<8x32xf32> to vector<1x8x32xf32>
    tpu.vector_store %arg4[%c3, %c0_13, %c0_14], %33 {strides = array<i32>} : memref<4x8x32xf32, #tpu.memory_space<vmem>>, vector<1x8x32xf32>,
    %c1 = arith.constant 1 : index
    %c0_15 = arith.constant 0 : index
    %c0_16 = arith.constant 0 : index
    %34 = vector.load %arg1[%c1, %c0_15, %c0_16] : memref<4x8x256xf32, #tpu.memory_space<vmem>>, vector<1x8x256xf32>
    %35 = vector.shape_cast %34 : vector<1x8x256xf32> to vector<8x256xf32>
    %c0_17 = arith.constant 0 : index
    %c0_18 = arith.constant 0 : index
    %36 = vector.load %arg2[%c0_17, %c0_18] : memref<64x256xf32, #tpu.memory_space<vmem>>, vector<64x256xf32>
    %cst_19 = arith.constant dense<0.000000e+00> : vector<8x256xf32>
    %37 = tpu.matmul %25, %36, %cst_19 {dimension_numbers = #tpu.dot_dimension_numbers<[1], [0], [0], [1], [0, 0, 1, 1], [], []>} : vector<8x64xf32>, vector<64x256xf32>, vector<8x256xf32> -> vector<8x256xf32>
    %38 = arith.addf %35, %37 : vector<8x256xf32>
    %39 = vector.extract_strided_slice %38 {offsets = [0, 0], sizes = [8, 192], strides = [1, 1]} : vector<8x256xf32> to vector<8x192xf32>
    %40 = arith.negf %39 : vector<8x192xf32>
    %41 = math.exp %40 : vector<8x192xf32>
    %cst_20 = arith.constant 1.000000e+00 : f32
    %42 = vector.broadcast %cst_20 : f32 to vector<8x192xf32>
    %43 = arith.addf %42, %41 : vector<8x192xf32>
    %44 = arith.divf %42, %43 : vector<8x192xf32>
    %45 = vector.extract_strided_slice %38 {offsets = [0, 192], sizes = [8, 64], strides = [1, 1]} : vector<8x256xf32> to vector<8x64xf32>
    %46 = math.tanh %45 : vector<8x64xf32>
    %47 = vector.extract_strided_slice %44 {offsets = [0, 0], sizes = [8, 64], strides = [1, 1]} : vector<8x192xf32> to vector<8x64xf32>
    %48 = vector.extract_strided_slice %44 {offsets = [0, 64], sizes = [8, 64], strides = [1, 1]} : vector<8x192xf32> to vector<8x64xf32>
    %49 = vector.extract_strided_slice %44 {offsets = [0, 128], sizes = [8, 64], strides = [1, 1]} : vector<8x192xf32> to vector<8x64xf32>
    %50 = arith.mulf %48, %23 : vector<8x64xf32>
    %51 = arith.mulf %47, %46 : vector<8x64xf32>
    %52 = arith.addf %50, %51 : vector<8x64xf32>
    %53 = math.tanh %52 : vector<8x64xf32>
    %54 = arith.mulf %49, %53 : vector<8x64xf32>
    %55 = vector.extract_strided_slice %54 {offsets = [0, 0], sizes = [8, 32], strides = [1, 1]} : vector<8x64xf32> to vector<8x32xf32>
    %c1_21 = arith.constant 1 : index
    %c0_22 = arith.constant 0 : index
    %c0_23 = arith.constant 0 : index
    %56 = vector.load %arg3[%c1_21, %c0_22, %c0_23] : memref<4x8x32xf32, #tpu.memory_space<vmem>>, vector<1x8x32xf32>
    %57 = vector.shape_cast %56 : vector<1x8x32xf32> to vector<8x32xf32>
    %58 = vector.shape_cast %55 : vector<8x32xf32> to vector<1x8x32xf32>
    tpu.vector_store %arg3[%c1_21, %c0_22, %c0_23], %58 {strides = array<i32>} : memref<4x8x32xf32, #tpu.memory_space<vmem>>, vector<1x8x32xf32>,
    %59 = vector.extract_strided_slice %54 {offsets = [0, 32], sizes = [8, 32], strides = [1, 1]} : vector<8x64xf32> to vector<8x32xf32>
    %c2 = arith.constant 2 : index
    %c0_24 = arith.constant 0 : index
    %c0_25 = arith.constant 0 : index
    %60 = vector.load %arg4[%c2, %c0_24, %c0_25] : memref<4x8x32xf32, #tpu.memory_space<vmem>>, vector<1x8x32xf32>
    %61 = vector.shape_cast %60 : vector<1x8x32xf32> to vector<8x32xf32>
    %62 = vector.shape_cast %59 : vector<8x32xf32> to vector<1x8x32xf32>
    tpu.vector_store %arg4[%c2, %c0_24, %c0_25], %62 {strides = array<i32>} : memref<4x8x32xf32, #tpu.memory_space<vmem>>, vector<1x8x32xf32>,
    %c2_26 = arith.constant 2 : index
    %c0_27 = arith.constant 0 : index
    %c0_28 = arith.constant 0 : index
    %63 = vector.load %arg1[%c2_26, %c0_27, %c0_28] : memref<4x8x256xf32, #tpu.memory_space<vmem>>, vector<1x8x256xf32>
    %64 = vector.shape_cast %63 : vector<1x8x256xf32> to vector<8x256xf32>
    %c0_29 = arith.constant 0 : index
    %c0_30 = arith.constant 0 : index
    %65 = vector.load %arg2[%c0_29, %c0_30] : memref<64x256xf32, #tpu.memory_space<vmem>>, vector<64x256xf32>
    %cst_31 = arith.constant dense<0.000000e+00> : vector<8x256xf32>
    %66 = tpu.matmul %54, %65, %cst_31 {dimension_numbers = #tpu.dot_dimension_numbers<[1], [0], [0], [1], [0, 0, 1, 1], [], []>} : vector<8x64xf32>, vector<64x256xf32>, vector<8x256xf32> -> vector<8x256xf32>
    %67 = arith.addf %64, %66 : vector<8x256xf32>
    %68 = vector.extract_strided_slice %67 {offsets = [0, 0], sizes = [8, 192], strides = [1, 1]} : vector<8x256xf32> to vector<8x192xf32>
    %69 = arith.negf %68 : vector<8x192xf32>
    %70 = math.exp %69 : vector<8x192xf32>
    %cst_32 = arith.constant 1.000000e+00 : f32
    %71 = vector.broadcast %cst_32 : f32 to vector<8x192xf32>
    %72 = arith.addf %71, %70 : vector<8x192xf32>
    %73 = arith.divf %71, %72 : vector<8x192xf32>
    %74 = vector.extract_strided_slice %67 {offsets = [0, 192], sizes = [8, 64], strides = [1, 1]} : vector<8x256xf32> to vector<8x64xf32>
    %75 = math.tanh %74 : vector<8x64xf32>
    %76 = vector.extract_strided_slice %73 {offsets = [0, 0], sizes = [8, 64], strides = [1, 1]} : vector<8x192xf32> to vector<8x64xf32>
    %77 = vector.extract_strided_slice %73 {offsets = [0, 64], sizes = [8, 64], strides = [1, 1]} : vector<8x192xf32> to vector<8x64xf32>
    %78 = vector.extract_strided_slice %73 {offsets = [0, 128], sizes = [8, 64], strides = [1, 1]} : vector<8x192xf32> to vector<8x64xf32>
    %79 = arith.mulf %77, %52 : vector<8x64xf32>
    %80 = arith.mulf %76, %75 : vector<8x64xf32>
    %81 = arith.addf %79, %80 : vector<8x64xf32>
    %82 = math.tanh %81 : vector<8x64xf32>
    %83 = arith.mulf %78, %82 : vector<8x64xf32>
    %84 = vector.extract_strided_slice %83 {offsets = [0, 0], sizes = [8, 32], strides = [1, 1]} : vector<8x64xf32> to vector<8x32xf32>
    %c2_33 = arith.constant 2 : index
    %c0_34 = arith.constant 0 : index
    %c0_35 = arith.constant 0 : index
    %85 = vector.load %arg3[%c2_33, %c0_34, %c0_35] : memref<4x8x32xf32, #tpu.memory_space<vmem>>, vector<1x8x32xf32>
    %86 = vector.shape_cast %85 : vector<1x8x32xf32> to vector<8x32xf32>
    %87 = vector.shape_cast %84 : vector<8x32xf32> to vector<1x8x32xf32>
    tpu.vector_store %arg3[%c2_33, %c0_34, %c0_35], %87 {strides = array<i32>} : memref<4x8x32xf32, #tpu.memory_space<vmem>>, vector<1x8x32xf32>,
    %88 = vector.extract_strided_slice %83 {offsets = [0, 32], sizes = [8, 32], strides = [1, 1]} : vector<8x64xf32> to vector<8x32xf32>
    %c1_36 = arith.constant 1 : index
    %c0_37 = arith.constant 0 : index
    %c0_38 = arith.constant 0 : index
    %89 = vector.load %arg4[%c1_36, %c0_37, %c0_38] : memref<4x8x32xf32, #tpu.memory_space<vmem>>, vector<1x8x32xf32>
    %90 = vector.shape_cast %89 : vector<1x8x32xf32> to vector<8x32xf32>
    %91 = vector.shape_cast %88 : vector<8x32xf32> to vector<1x8x32xf32>
    tpu.vector_store %arg4[%c1_36, %c0_37, %c0_38], %91 {strides = array<i32>} : memref<4x8x32xf32, #tpu.memory_space<vmem>>, vector<1x8x32xf32>,
    %c3_39 = arith.constant 3 : index
    %c0_40 = arith.constant 0 : index
    %c0_41 = arith.constant 0 : index
    %92 = vector.load %arg1[%c3_39, %c0_40, %c0_41] : memref<4x8x256xf32, #tpu.memory_space<vmem>>, vector<1x8x256xf32>
    %93 = vector.shape_cast %92 : vector<1x8x256xf32> to vector<8x256xf32>
    %c0_42 = arith.constant 0 : index
    %c0_43 = arith.constant 0 : index
    %94 = vector.load %arg2[%c0_42, %c0_43] : memref<64x256xf32, #tpu.memory_space<vmem>>, vector<64x256xf32>
    %cst_44 = arith.constant dense<0.000000e+00> : vector<8x256xf32>
    %95 = tpu.matmul %83, %94, %cst_44 {dimension_numbers = #tpu.dot_dimension_numbers<[1], [0], [0], [1], [0, 0, 1, 1], [], []>} : vector<8x64xf32>, vector<64x256xf32>, vector<8x256xf32> -> vector<8x256xf32>
    %96 = arith.addf %93, %95 : vector<8x256xf32>
    %97 = vector.extract_strided_slice %96 {offsets = [0, 0], sizes = [8, 192], strides = [1, 1]} : vector<8x256xf32> to vector<8x192xf32>
    %98 = arith.negf %97 : vector<8x192xf32>
    %99 = math.exp %98 : vector<8x192xf32>
    %cst_45 = arith.constant 1.000000e+00 : f32
    %100 = vector.broadcast %cst_45 : f32 to vector<8x192xf32>
    %101 = arith.addf %100, %99 : vector<8x192xf32>
    %102 = arith.divf %100, %101 : vector<8x192xf32>
    %103 = vector.extract_strided_slice %96 {offsets = [0, 192], sizes = [8, 64], strides = [1, 1]} : vector<8x256xf32> to vector<8x64xf32>
    %104 = math.tanh %103 : vector<8x64xf32>
    %105 = vector.extract_strided_slice %102 {offsets = [0, 0], sizes = [8, 64], strides = [1, 1]} : vector<8x192xf32> to vector<8x64xf32>
    %106 = vector.extract_strided_slice %102 {offsets = [0, 64], sizes = [8, 64], strides = [1, 1]} : vector<8x192xf32> to vector<8x64xf32>
    %107 = vector.extract_strided_slice %102 {offsets = [0, 128], sizes = [8, 64], strides = [1, 1]} : vector<8x192xf32> to vector<8x64xf32>
    %108 = arith.mulf %106, %81 : vector<8x64xf32>
    %109 = arith.mulf %105, %104 : vector<8x64xf32>
    %110 = arith.addf %108, %109 : vector<8x64xf32>
    %111 = math.tanh %110 : vector<8x64xf32>
    %112 = arith.mulf %107, %111 : vector<8x64xf32>
    %113 = vector.extract_strided_slice %112 {offsets = [0, 0], sizes = [8, 32], strides = [1, 1]} : vector<8x64xf32> to vector<8x32xf32>
    %c3_46 = arith.constant 3 : index
    %c0_47 = arith.constant 0 : index
    %c0_48 = arith.constant 0 : index
    %114 = vector.load %arg3[%c3_46, %c0_47, %c0_48] : memref<4x8x32xf32, #tpu.memory_space<vmem>>, vector<1x8x32xf32>
    %115 = vector.shape_cast %114 : vector<1x8x32xf32> to vector<8x32xf32>
    %116 = vector.shape_cast %113 : vector<8x32xf32> to vector<1x8x32xf32>
    tpu.vector_store %arg3[%c3_46, %c0_47, %c0_48], %116 {strides = array<i32>} : memref<4x8x32xf32, #tpu.memory_space<vmem>>, vector<1x8x32xf32>,
    %117 = vector.extract_strided_slice %112 {offsets = [0, 32], sizes = [8, 32], strides = [1, 1]} : vector<8x64xf32> to vector<8x32xf32>
    %c0_49 = arith.constant 0 : index
    %c0_50 = arith.constant 0 : index
    %c0_51 = arith.constant 0 : index
    %118 = vector.load %arg4[%c0_49, %c0_50, %c0_51] : memref<4x8x32xf32, #tpu.memory_space<vmem>>, vector<1x8x32xf32>
    %119 = vector.shape_cast %118 : vector<1x8x32xf32> to vector<8x32xf32>
    %120 = vector.shape_cast %117 : vector<8x32xf32> to vector<1x8x32xf32>
    tpu.vector_store %arg4[%c0_49, %c0_50, %c0_51], %120 {strides = array<i32>} : memref<4x8x32xf32, #tpu.memory_space<vmem>>, vector<1x8x32xf32>,
    %c0_52 = arith.constant 0 : index
    %c0_53 = arith.constant 0 : index
    %121 = vector.load %arg6[%c0_52, %c0_53] : memref<8x64xf32, #tpu.memory_space<vmem>>, vector<8x64xf32>
    tpu.vector_store %arg6[%c0_52, %c0_53], %112 {strides = array<i32>} : memref<8x64xf32, #tpu.memory_space<vmem>>, vector<8x64xf32>,
    %c0_54 = arith.constant 0 : index
    %c0_55 = arith.constant 0 : index
    %122 = vector.load %arg7[%c0_54, %c0_55] : memref<8x64xf32, #tpu.memory_space<vmem>>, vector<8x64xf32>
    tpu.vector_store %arg7[%c0_54, %c0_55], %110 {strides = array<i32>} : memref<8x64xf32, #tpu.memory_space<vmem>>, vector<8x64xf32>,
    %c1_i32 = arith.constant 1 : i32
    %123 = arith.cmpi eq, %arg0, %c1_i32 : i32
    %124 = arith.extui %123 : i1 to i32
    %c0_i32_56 = arith.constant 0 : i32
    %125 = arith.cmpi ne, %124, %c0_i32_56 : i32
    scf.if %125 {
      %c0_57 = arith.constant 0 : index
      %c0_58 = arith.constant 0 : index
      %126 = vector.load %arg5[%c0_57, %c0_58] : memref<8x64xf32, #tpu.memory_space<vmem>>, vector<8x64xf32>
      tpu.vector_store %arg5[%c0_57, %c0_58], %112 {strides = array<i32>} : memref<8x64xf32, #tpu.memory_space<vmem>>, vector<8x64xf32>,
    } else {
    }
    return
  }
  func.func @transform_0(%arg0: i32) -> (i32, i32, i32) {
    %c0_i32 = arith.constant 0 : i32
    %c0_i32_0 = arith.constant 0 : i32
    %c0_i32_1 = arith.constant 0 : i32
    return %arg0, %c0_i32, %c0_i32_0 : i32, i32, i32
  }
  func.func @transform_1(%arg0: i32) -> (i32, i32) {
    %c0_i32 = arith.constant 0 : i32
    %c0_i32_0 = arith.constant 0 : i32
    %c0_i32_1 = arith.constant 0 : i32
    return %c0_i32, %c0_i32_0 : i32, i32
  }
  func.func @transform_2(%arg0: i32) -> (i32, i32, i32) {
    %c0_i32 = arith.constant 0 : i32
    %c0_i32_0 = arith.constant 0 : i32
    %c0_i32_1 = arith.constant 0 : i32
    return %arg0, %c0_i32, %c0_i32_0 : i32, i32, i32
  }
  func.func @transform_3(%arg0: i32) -> (i32, i32, i32) {
    %c1_i32 = arith.constant 1 : i32
    %0 = arith.subi %c1_i32, %arg0 : i32
    %c0_i32 = arith.constant 0 : i32
    %c0_i32_0 = arith.constant 0 : i32
    %c0_i32_1 = arith.constant 0 : i32
    return %0, %c0_i32, %c0_i32_0 : i32, i32, i32
  }
  func.func @transform_4(%arg0: i32) -> (i32, i32) {
    %c0_i32 = arith.constant 0 : i32
    %c0_i32_0 = arith.constant 0 : i32
    %c0_i32_1 = arith.constant 0 : i32
    return %c0_i32, %c0_i32_0 : i32, i32
  }
}

</mosaic_0001>

<llo_original>
// kernel: bilstm_forward.2
$region0: #{bilstm_forward.2}
  #allocation0 [shape = 'u32[]', space=smem, size = 0x4, offset = 0x4, fixed_abs, tag = 'smem constant byte address 0x4 - core index']
  #allocation1 [shape = 'u32[144,128]{1,0:T(1,128)}', space=vmem, size = 0x12000, scoped, tag = 'internal scratch']
  #allocation2 [shape = 'f32[8,64]{1,0:T(8,128)}', space=vmem, size = 0x1000, scoped, tag = 'scratch operand']
  #allocation3 [shape = 'f32[8,64]{1,0:T(8,128)}', space=vmem, size = 0x1000, scoped, tag = 'scratch operand']
  %s0 = inlined_call_operand.vmem [shape: f32[8,8,256], index: 0, kind: input, shape index: {}]
  %s1 = inlined_call_operand.vmem [shape: f32[64,256], index: 1, kind: input, shape index: {}]
  %s2 = inlined_call_operand.vmem [shape: f32[8,8,32], index: 2, kind: output, shape index: {0}]
  %s3 = inlined_call_operand.vmem [shape: f32[8,8,32], index: 3, kind: output, shape index: {1}]
  %s4 = inlined_call_operand.hbm [shape: f32[8,64], index: 4, kind: output, shape index: {2}]
  %5 = xla_tuple %s2, %s3, %s4
  %s6 = sld [smem:[#allocation0]]
  $region65: #{bilstm_forward.2} parent=0
    _
  %s8 = ssub.s32 1, %s6
  %s9 = scalar_select 0, %s8, %s6
  $region1: #{bilstm_forward.2} parent=0
    #allocation4 [shape = 'u8[4096]{0}', space=vmem, size = 0x1000, scoped, tag = 'output window, operand 2, single buffered']
    #allocation5 [shape = 's32[2]{0}', space=sflag, size = 0x8, scoped, tag = 'scoped memory for bilstm_forward.2']
    %10 = vsyncpa [#allocation5], 0
    loop: start=0, step=1, limit=4
    $region2: #{bilstm_forward.2} parent=1 // loop_pre_header
      _
    $region3: #{bilstm_forward.2} parent=1 // loop_header
      %s12 = sphi 0, %s16
      %p13 = scmp.ge.s32.totalorder %s12, 4
      %s22 = sphi 0, %s24
      %s25 = sphi 0, %s22
      %s26 = sphi 0, %s25
      %s42 = sphi 0, %s26
      %s46 = sphi 0, %s46
      %s48 = sphi 0, %s46
      %s49 = sphi 0, %s48
      %s63 = sphi 0, %s49
      %s69 = sphi 0, %s71
      %s72 = sphi 0, %s69
      %s73 = sphi 0, %s72
      %s89 = sphi 0, %s73
      %s97 = sphi 0, %s99
      %s100 = sphi 0, %s97
      %s101 = sphi 0, %s100
      %s117 = sphi 0, %s101
      %s121 = sphi 0, %s121
      %s123 = sphi 0, %s121
      %s124 = sphi 0, %s123
      %s138 = sphi 0, %s124
    $region4: #{bilstm_forward.2} parent=1 // loop_header_branch
      %15 = sbr.rel (%p13) target = $region8
    $region5: #{bilstm_forward.2} parent=1 // loop_body
      %s17 = ssub.s32 %s12, 1
      %s18 = ssub.s32 %s12, 2
      %s19 = sadd.s32 %s12, 1
      %s20 = ssub.s32 %s12, %s19
      %p21 = scmp.eq.s32.totalorder %s20, 0
      %s23 = sadd.s32 %s22, 1
      %s24 = scalar_select %p21, %s22, %s23
      %p27 = pneg %p21
      %p28 = scmp.eq.s32.totalorder %s12, 1
      %p29 = por %p27, %p28
      %p30 = scmp.ne.s32.totalorder %s22, %s25
      %p31 = scmp.eq.s32.totalorder %s12, 0
      %p32 = por %p30, %p31
      %p33 = scmp.ne.s32.totalorder %s22, %s25
      %p34 = scmp.eq.s32.totalorder %s17, 1
      %p35 = por %p33, %p34
      %p36 = scmp.ne.s32.totalorder %s25, %s26
      %p37 = scmp.eq.s32.totalorder %s17, 0
      %p38 = por %p36, %p37
      %p39 = scmp.ne.s32.totalorder %s25, %s26
      %p40 = scmp.eq.s32.totalorder %s18, 1
      %p41 = por %p39, %p40
      %p43 = scmp.ne.s32.totalorder %s26, %s42
      %p44 = scmp.eq.s32.totalorder %s18, 0
      %p45 = por %p43, %p44
      %s47 = sadd.s32 %s46, 1
      %p50 = scmp.eq.s32.totalorder %s12, 1
      %p51 = scmp.ne.s32.totalorder %s46, %s48
      %p52 = scmp.eq.s32.totalorder %s12, 0
      %p53 = por %p51, %p52
      %p54 = scmp.ne.s32.totalorder %s46, %s48
      %p55 = scmp.eq.s32.totalorder %s17, 1
      %p56 = por %p54, %p55
      %p57 = scmp.ne.s32.totalorder %s48, %s49
      %p58 = scmp.eq.s32.totalorder %s17, 0
      %p59 = por %p57, %p58
      %p60 = scmp.ne.s32.totalorder %s48, %s49
      %p61 = scmp.eq.s32.totalorder %s18, 1
      %p62 = por %p60, %p61
      %p64 = scmp.ne.s32.totalorder %s49, %s63
      %p65 = scmp.eq.s32.totalorder %s18, 0
      %p66 = por %p64, %p65
      %s67 = ssub.s32 %s12, %s19
      %p68 = scmp.eq.s32.totalorder %s67, 0
      %s70 = sadd.s32 %s69, 1
      %s71 = scalar_select %p68, %s69, %s70
      %p74 = pneg %p68
      %p75 = scmp.eq.s32.totalorder %s12, 1
      %p76 = por %p74, %p75
      %p77 = scmp.ne.s32.totalorder %s69, %s72
      %p78 = scmp.eq.s32.totalorder %s12, 0
      %p79 = por %p77, %p78
      %p80 = scmp.ne.s32.totalorder %s69, %s72
      %p81 = scmp.eq.s32.totalorder %s17, 1
      %p82 = por %p80, %p81
      %p83 = scmp.ne.s32.totalorder %s72, %s73
      %p84 = scmp.eq.s32.totalorder %s17, 0
      %p85 = por %p83, %p84
      %p86 = scmp.ne.s32.totalorder %s72, %s73
      %p87 = scmp.eq.s32.totalorder %s18, 1
      %p88 = por %p86, %p87
      %p90 = scmp.ne.s32.totalorder %s73, %s89
      %p91 = scmp.eq.s32.totalorder %s18, 0
      %p92 = por %p90, %p91
      %s93 = ssub.s32 1, %s12
      %s94 = ssub.s32 1, %s19
      %s95 = ssub.s32 %s93, %s94
      %p96 = scmp.eq.s32.totalorder %s95, 0
      %s98 = sadd.s32 %s97, 1
      %s99 = scalar_select %p96, %s97, %s98
      %p102 = pneg %p96
      %p103 = scmp.eq.s32.totalorder %s12, 1
      %p104 = por %p102, %p103
      %p105 = scmp.ne.s32.totalorder %s97, %s100
      %p106 = scmp.eq.s32.totalorder %s12, 0
      %p107 = por %p105, %p106
      %p108 = scmp.ne.s32.totalorder %s97, %s100
      %p109 = scmp.eq.s32.totalorder %s17, 1
      %p110 = por %p108, %p109
      %p111 = scmp.ne.s32.totalorder %s100, %s101
      %p112 = scmp.eq.s32.totalorder %s17, 0
      %p113 = por %p111, %p112
      %p114 = scmp.ne.s32.totalorder %s100, %s101
      %p115 = scmp.eq.s32.totalorder %s18, 1
      %p116 = por %p114, %p115
      %p118 = scmp.ne.s32.totalorder %s101, %s117
      %p119 = scmp.eq.s32.totalorder %s18, 0
      %p120 = por %p118, %p119
      %s122 = sadd.s32 %s121, 1
      %p125 = scmp.eq.s32.totalorder %s12, 1
      %p126 = scmp.ne.s32.totalorder %s121, %s123
      %p127 = scmp.eq.s32.totalorder %s12, 0
      %p128 = por %p126, %p127
      %p129 = scmp.ne.s32.totalorder %s121, %s123
      %p130 = scmp.eq.s32.totalorder %s17, 1
      %p131 = por %p129, %p130
      %p132 = scmp.ne.s32.totalorder %s123, %s124
      %p133 = scmp.eq.s32.totalorder %s17, 0
      %p134 = por %p132, %p133
      %p135 = scmp.ne.s32.totalorder %s123, %s124
      %p136 = scmp.eq.s32.totalorder %s18, 1
      %p137 = por %p135, %p136
      %p139 = scmp.ne.s32.totalorder %s124, %s138
      %p140 = scmp.eq.s32.totalorder %s18, 0
      %p141 = por %p139, %p140
      %p142 = scmp.le.s32.totalorder 1, %s12
      %p143 = scmp.lt.s32.totalorder %s12, 3
      %p144 = pnand %p142, %p143
      %p145 = pneg %p144
      // Predicated region
      $region9: #{bilstm_forward.2} parent=5 // pred_check
        _
      $region10: #{bilstm_forward.2} parent=5 // pred_check_branch
        %147 = sbr.rel (%p144) target = $region12
      $region11: #{bilstm_forward.2} parent=5 // pred_region
        %s148 = ssub.s32 %s12, 1
        // Predicated region
        $region13: #{bilstm_forward.2} parent=11 // pred_check
          %p149 = pneg %p59
        $region14: #{bilstm_forward.2} parent=11 // pred_check_branch
          %151 = sbr.rel (%p149) target = $region16
        $region15: #{bilstm_forward.2} parent=11 // pred_region
          _
        $region16: #{bilstm_forward.2} parent=11 // pred_fallthru
          _
      $region12: #{bilstm_forward.2} parent=5 // pred_fallthru
        _
      %p152 = scmp.lt.s32.totalorder %s12, 2
      // Predicated region
      $region17: #{bilstm_forward.2} parent=5 // pred_check
        %p153 = pneg %p152
      $region18: #{bilstm_forward.2} parent=5 // pred_check_branch
        %155 = sbr.rel (%p153) target = $region20
      $region19: #{bilstm_forward.2} parent=5 // pred_region
        // Predicated region
        $region21: #{bilstm_forward.2} parent=19 // pred_check
          %p156 = pneg %p32
        $region22: #{bilstm_forward.2} parent=19 // pred_check_branch
          %158 = sbr.rel (%p156) target = $region24
        $region23: #{bilstm_forward.2} parent=19 // pred_region
          %s159 = smul.u32 4, %s12
          %p160 = scmp.lt.s32.totalorder %s159, 7
          %s161 = scalar_select %p160, %s159, 7
          %s162 = smul.addr %s161, 2
          %s163 = smul.addr %s162, 8
          %s164 = scalar_lea.vmem %s0, %s163
          %s165 = smul.u32 4, %s12
        $region24: #{bilstm_forward.2} parent=19 // pred_fallthru
          _
      $region20: #{bilstm_forward.2} parent=5 // pred_fallthru
        _
      %p166 = scmp.le.s32.totalorder 1, %s12
      %p167 = scmp.lt.s32.totalorder %s12, 3
      %p168 = pnand %p166, %p167
      %p169 = pneg %p168
      // Predicated region
      $region25: #{bilstm_forward.2} parent=5 // pred_check
        _
      $region26: #{bilstm_forward.2} parent=5 // pred_check_branch
        %171 = sbr.rel (%p168) target = $region28
      $region27: #{bilstm_forward.2} parent=5 // pred_region
        %s172 = ssub.s32 %s12, 1
        %s173 = smul.u32 4, %s17
        %p174 = scmp.lt.s32.totalorder %s173, 7
        %s175 = scalar_select %p174, %s173, 7
        %s176 = smul.addr %s175, 2
        %s177 = smul.addr %s176, 8
        %s178 = scalar_lea.vmem %s0, %s177
        %p179 = pneg %p38
        %p180 = pneg %p35
        %p181 = pneg %p59
        %p182 = pneg %p56
        %p183 = pneg %p85
        %p184 = pneg %p82
        %s185 = smul.u32 4, %s17
        %p186 = scmp.lt.s32.totalorder %s185, 7
        %s187 = scalar_select %p186, %s185, 7
        %s188 = smul.addr %s187, 8
        %s189 = scalar_lea.vmem %s2, %s188
        %p190 = pneg %p113
        %p191 = pneg %p110
        %s192 = ssub.s32 1, %s17
        %s193 = smul.u32 4, %s192
        %p194 = scmp.lt.s32.totalorder %s193, 7
        %s195 = scalar_select %p194, %s193, 7
        %s196 = smul.addr %s195, 8
        %s197 = scalar_lea.vmem %s3, %s196
        %p198 = pneg %p134
        %p199 = pneg %p131
        %s200 = smul.u32 4, %s17
        %p201 = scmp.lt.s32.totalorder %s200, 7
        %s202 = scalar_select %p201, %s200, 7
        %s203 = smul.addr %s202, 2
        %s204 = smul.addr %s203, 8
        %s205 = scalar_lea.vmem %s0, %s204
        %s206 = smul.u32 4, %s17
        %s207 = smul.u32 4, %s17
        %p208 = scmp.lt.s32.totalorder %s207, 7
        %s209 = scalar_select %p208, %s207, 7
        %s210 = smul.addr %s209, 8
        %s211 = scalar_lea.vmem %s2, %s210
        %s212 = smul.u32 4, %s17
        %s213 = ssub.s32 1, %s17
        %s214 = smul.u32 4, %s213
        %p215 = scmp.lt.s32.totalorder %s214, 7
        %s216 = scalar_select %p215, %s214, 7
        %s217 = smul.addr %s216, 8
        %s218 = scalar_lea.vmem %s3, %s217
        %s219 = ssub.s32 1, %s17
        %s220 = smul.u32 4, %s219
        %p221 = scmp.eq.s32.totalorder %s17, 0
        // Predicated region
        $region29: #{bilstm_forward.2} parent=27 // pred_check
          %p222 = pneg %p221
        $region30: #{bilstm_forward.2} parent=27 // pred_check_branch
          %224 = sbr.rel (%p222) target = $region32
        $region31: #{bilstm_forward.2} parent=27 // pred_region
          %vm225 = vcmask 523264
          %226 = vst.msk [vmem:[#allocation2] sm:$0xff] %vm225, 0.0
          %227 = vst.msk [vmem:[#allocation3] sm:$0xff] %vm225, 0.0
        $region32: #{bilstm_forward.2} parent=27 // pred_fallthru
          _
        %v228 = vld [vmem:[#allocation2] sm:$0xff]
        %v229 = vld [vmem:[#allocation3] sm:$0xff]
        %v230 = vld [vmem:[%s205] sm:$0xff]
        %v231 = vld [vmem:[%s205 + $0x8] sm:$0xff]
        %v232 = vld [vmem:[%s1] sm:$0xff]
        %v233 = vld [vmem:[%s1 + $0x8] sm:$0xff]
        %v234 = vld [vmem:[%s1 + $0x10] sm:$0xff]
        %v235 = vld [vmem:[%s1 + $0x18] sm:$0xff]
        %v236 = vld [vmem:[%s1 + $0x20] sm:$0xff]
        %v237 = vld [vmem:[%s1 + $0x28] sm:$0xff]
        %v238 = vld [vmem:[%s1 + $0x30] sm:$0xff]
        %v239 = vld [vmem:[%s1 + $0x38] sm:$0xff]
        %v240 = vld [vmem:[%s1 + $0x40] sm:$0xff]
        %v241 = vld [vmem:[%s1 + $0x48] sm:$0xff]
        %v242 = vld [vmem:[%s1 + $0x50] sm:$0xff]
        %v243 = vld [vmem:[%s1 + $0x58] sm:$0xff]
        %v244 = vld [vmem:[%s1 + $0x60] sm:$0xff]
        %v245 = vld [vmem:[%s1 + $0x68] sm:$0xff]
        %v246 = vld [vmem:[%s1 + $0x70] sm:$0xff]
        %v247 = vld [vmem:[%s1 + $0x78] sm:$0xff]
        %vm248 = vcmask 523264
        %v250 = vsel %vm248, %v228, 0
        %252 = vmatprep.subr.mxu0 %v233
        %253 = vmatpush1.msra.mxu0 %v232
        %254 = vmatprep.subr.mxu0 %v235
        %255 = vmatpush1.msra.mxu0 %v234
        %256 = vmatprep.subr.mxu0 %v237
        %257 = vmatpush1.msra.mxu0 %v236
        %258 = vmatprep.subr.mxu0 %v239
        %259 = vmatpush1.msra.mxu0 %v238
        %260 = vmatprep.subr.mxu0 %v241
        %261 = vmatpush1.msra.mxu0 %v240
        %262 = vmatprep.subr.mxu0 %v243
        %263 = vmatpush1.msra.mxu0 %v242
        %264 = vmatprep.subr.mxu0 %v245
        %265 = vmatpush1.msra.mxu0 %v244
        %266 = vmatprep.subr.mxu0 %v247
        %267 = vmatpush1.msra.mxu0 %v246
        %268 = vmatprep.subr.mxu0 0.0
        %269 = vmatpush1.msra.mxu0 0.0
        %270 = vmatprep.subr.mxu0 0.0
        %271 = vmatpush1.msra.mxu0 0.0
        %272 = vmatprep.subr.mxu0 0.0
        %273 = vmatpush1.msra.mxu0 0.0
        %274 = vmatprep.subr.mxu0 0.0
        %275 = vmatpush1.msra.mxu0 0.0
        %276 = vmatprep.subr.mxu0 0.0
        %277 = vmatpush1.msra.mxu0 0.0
        %278 = vmatprep.subr.mxu0 0.0
        %279 = vmatpush1.msra.mxu0 0.0
        %280 = vmatprep.subr.mxu0 0.0
        %281 = vmatpush1.msra.mxu0 0.0
        %282 = vmatprep.subr.mxu0 0.0
        %283 = vmatpush1.msra.mxu0 0.0
        %284 = vmatprep.subr.mxu0 0.0
        %285 = vmatpush1.msra.mxu0 0.0
        %286 = vmatprep.subr.mxu0 0.0
        %287 = vmatpush1.msra.mxu0 0.0
        %288 = vmatprep.subr.mxu0 0.0
        %289 = vmatpush1.msra.mxu0 0.0
        %290 = vmatprep.subr.mxu0 0.0
        %291 = vmatpush1.msra.mxu0 0.0
        %292 = vmatprep.subr.mxu0 0.0
        %293 = vmatpush1.msra.mxu0 0.0
        %294 = vmatprep.subr.mxu0 0.0
        %295 = vmatpush1.msra.mxu0 0.0
        %296 = vmatprep.subr.mxu0 0.0
        %297 = vmatpush1.msra.mxu0 0.0
        %298 = vmatprep.subr.mxu0 0.0
        %299 = vmatpush1.msra.mxu0 0.0
        %300 = vmatprep.subr.mxu0 0.0
        %301 = vmatpush1.msra.mxu0 0.0
        %302 = vmatprep.subr.mxu0 0.0
        %303 = vmatpush1.msra.mxu0 0.0
        %304 = vmatprep.subr.mxu0 0.0
        %305 = vmatpush1.msra.mxu0 0.0
        %306 = vmatprep.subr.mxu0 0.0
        %307 = vmatpush1.msra.mxu0 0.0
        %308 = vmatprep.subr.mxu0 0.0
        %309 = vmatpush1.msra.mxu0 0.0
        %310 = vmatprep.subr.mxu0 0.0
        %311 = vmatpush1.msra.mxu0 0.0
        %312 = vmatprep.subr.mxu0 0.0
        %313 = vmatpush1.msra.mxu0 0.0
        %314 = vmatprep.subr.mxu0 0.0
        %315 = vmatpush1.msra.mxu0 0.0
        %316 = vmatprep.mubr.f32.mxu0 0.0
        %317 = vmatmul.mubr.f32.gmra.mrb[0].mxu0 %v250
        %v318 = vpop.f32.mrb[0].mxu0
        %v319 = vadd.f32 0.0, %v318
        %v320 = vpop.f32.mrb[0].mxu0
        %v321 = vadd.f32 0.0, %v320
        %322 = vdwg.mxu0
        %v323 = vadd.f32 %v230, %v319
        %v324 = vadd.f32 %v231, %v321
        %v325 = vxor.u32 %v323, 2147483648
        %v326 = vxor.u32 %v324, 2147483648
        %v327 = vmul.f32 %v325, 1.442695
        %v328 = vpow.pop %v327
        %v329 = vmul.f32 %v326, 1.442695
        %v330 = vpow.pop %v329
        %v331 = vadd.f32 %v328, 1.0
        %v332 = vadd.f32 %v330, 1.0
        %v333 = vrcp.pop %v331
        %v334 = vmul.f32 1.0, %v333
        %v335 = vrcp.pop %v332
        %v336 = vmul.f32 1.0, %v335
        %v337 = vtanh.pop %v324
        %339 = vrot.lane.b32.xlu0 %v229, 64
        %v340 = vpop.permute.xlu0 %339
        %v342 = vmul.f32 %v334, %v340
        %344 = vrot.lane.b32.xlu0 %v337, 64
        %v345 = vpop.permute.xlu0 %344
        %v347 = vmul.f32 %v334, %v345
        %349 = vrot.lane.b32.xlu0 %v347, 64
        %v350 = vpop.permute.xlu0 %349
        %v352 = vadd.f32 %v342, %v350
        %v353 = vtanh.pop %v352
        %355 = vrot.lane.b32.xlu0 %v353, 64
        %v356 = vpop.permute.xlu0 %355
        %v358 = vmul.f32 %v336, %v356
        %vm359 = vcmask 261120
        %360 = vst.msk [vmem:[%s211] sm:$0xff] %vm359, %v358
        %362 = vrot.lane.b32.xlu0 %v358, 96
        %v363 = vpop.permute.xlu0 %362
        %s365 = scalar_lea.vmem %s218, 24
        %366 = vst.msk [vmem:[%s365] sm:$0xff] %vm359, %v363
        %s367 = scalar_lea.vmem %s205, 16
        %v368 = vld [vmem:[%s367] sm:$0xff]
        %v369 = vld [vmem:[%s367 + $0x8] sm:$0xff]
        %v370 = vld [vmem:[%s1] sm:$0xff]
        %v371 = vld [vmem:[%s1 + $0x8] sm:$0xff]
        %v372 = vld [vmem:[%s1 + $0x10] sm:$0xff]
        %v373 = vld [vmem:[%s1 + $0x18] sm:$0xff]
        %v374 = vld [vmem:[%s1 + $0x20] sm:$0xff]
        %v375 = vld [vmem:[%s1 + $0x28] sm:$0xff]
        %v376 = vld [vmem:[%s1 + $0x30] sm:$0xff]
        %v377 = vld [vmem:[%s1 + $0x38] sm:$0xff]
        %v378 = vld [vmem:[%s1 + $0x40] sm:$0xff]
        %v379 = vld [vmem:[%s1 + $0x48] sm:$0xff]
        %v380 = vld [vmem:[%s1 + $0x50] sm:$0xff]
        %v381 = vld [vmem:[%s1 + $0x58] sm:$0xff]
        %v382 = vld [vmem:[%s1 + $0x60] sm:$0xff]
        %v383 = vld [vmem:[%s1 + $0x68] sm:$0xff]
        %v384 = vld [vmem:[%s1 + $0x70] sm:$0xff]
        %v385 = vld [vmem:[%s1 + $0x78] sm:$0xff]
        %v386 = vsel %vm248, %v358, 0
        %388 = vmatprep.subr.mxu0 %v371
        %389 = vmatpush1.msra.mxu0 %v370
        %390 = vmatprep.subr.mxu0 %v373
        %391 = vmatpush1.msra.mxu0 %v372
        %392 = vmatprep.subr.mxu0 %v375
        %393 = vmatpush1.msra.mxu0 %v374
        %394 = vmatprep.subr.mxu0 %v377
        %395 = vmatpush1.msra.mxu0 %v376
        %396 = vmatprep.subr.mxu0 %v379
        %397 = vmatpush1.msra.mxu0 %v378
        %398 = vmatprep.subr.mxu0 %v381
        %399 = vmatpush1.msra.mxu0 %v380
        %400 = vmatprep.subr.mxu0 %v383
        %401 = vmatpush1.msra.mxu0 %v382
        %402 = vmatprep.subr.mxu0 %v385
        %403 = vmatpush1.msra.mxu0 %v384
        %404 = vmatprep.subr.mxu0 0.0
        %405 = vmatpush1.msra.mxu0 0.0
        %406 = vmatprep.subr.mxu0 0.0
        %407 = vmatpush1.msra.mxu0 0.0
        %408 = vmatprep.subr.mxu0 0.0
        %409 = vmatpush1.msra.mxu0 0.0
        %410 = vmatprep.subr.mxu0 0.0
        %411 = vmatpush1.msra.mxu0 0.0
        %412 = vmatprep.subr.mxu0 0.0
        %413 = vmatpush1.msra.mxu0 0.0
        %414 = vmatprep.subr.mxu0 0.0
        %415 = vmatpush1.msra.mxu0 0.0
        %416 = vmatprep.subr.mxu0 0.0
        %417 = vmatpush1.msra.mxu0 0.0
        %418 = vmatprep.subr.mxu0 0.0
        %419 = vmatpush1.msra.mxu0 0.0
        %420 = vmatprep.subr.mxu0 0.0
        %421 = vmatpush1.msra.mxu0 0.0
        %422 = vmatprep.subr.mxu0 0.0
        %423 = vmatpush1.msra.mxu0 0.0
        %424 = vmatprep.subr.mxu0 0.0
        %425 = vmatpush1.msra.mxu0 0.0
        %426 = vmatprep.subr.mxu0 0.0
        %427 = vmatpush1.msra.mxu0 0.0
        %428 = vmatprep.subr.mxu0 0.0
        %429 = vmatpush1.msra.mxu0 0.0
        %430 = vmatprep.subr.mxu0 0.0
        %431 = vmatpush1.msra.mxu0 0.0
        %432 = vmatprep.subr.mxu0 0.0
        %433 = vmatpush1.msra.mxu0 0.0
        %434 = vmatprep.subr.mxu0 0.0
        %435 = vmatpush1.msra.mxu0 0.0
        %436 = vmatprep.subr.mxu0 0.0
        %437 = vmatpush1.msra.mxu0 0.0
        %438 = vmatprep.subr.mxu0 0.0
        %439 = vmatpush1.msra.mxu0 0.0
        %440 = vmatprep.subr.mxu0 0.0
        %441 = vmatpush1.msra.mxu0 0.0
        %442 = vmatprep.subr.mxu0 0.0
        %443 = vmatpush1.msra.mxu0 0.0
        %444 = vmatprep.subr.mxu0 0.0
        %445 = vmatpush1.msra.mxu0 0.0
        %446 = vmatprep.subr.mxu0 0.0
        %447 = vmatpush1.msra.mxu0 0.0
        %448 = vmatprep.subr.mxu0 0.0
        %449 = vmatpush1.msra.mxu0 0.0
        %450 = vmatprep.subr.mxu0 0.0
        %451 = vmatpush1.msra.mxu0 0.0
        %452 = vmatprep.mubr.f32.mxu0 0.0
        %453 = vmatmul.mubr.f32.gmra.mrb[0].mxu0 %v386
        %v454 = vpop.f32.mrb[0].mxu0
        %v455 = vadd.f32 0.0, %v454
        %v456 = vpop.f32.mrb[0].mxu0
        %v457 = vadd.f32 0.0, %v456
        %458 = vdwg.mxu0
        %v459 = vadd.f32 %v368, %v455
        %v460 = vadd.f32 %v369, %v457
        %v461 = vxor.u32 %v459, 2147483648
        %v462 = vxor.u32 %v460, 2147483648
        %v463 = vmul.f32 %v461, 1.442695
        %v464 = vpow.pop %v463
        %v465 = vmul.f32 %v462, 1.442695
        %v466 = vpow.pop %v465
        %v467 = vadd.f32 %v464, 1.0
        %v468 = vadd.f32 %v466, 1.0
        %v469 = vrcp.pop %v467
        %v470 = vmul.f32 1.0, %v469
        %v471 = vrcp.pop %v468
        %v472 = vmul.f32 1.0, %v471
        %v473 = vtanh.pop %v460
        %v474 = vmul.f32 %v470, %v352
        %476 = vrot.lane.b32.xlu0 %v473, 64
        %v477 = vpop.permute.xlu0 %476
        %v479 = vmul.f32 %v470, %v477
        %481 = vrot.lane.b32.xlu0 %v479, 64
        %v482 = vpop.permute.xlu0 %481
        %v484 = vadd.f32 %v474, %v482
        %v485 = vtanh.pop %v484
        %487 = vrot.lane.b32.xlu0 %v485, 64
        %v488 = vpop.permute.xlu0 %487
        %v490 = vmul.f32 %v472, %v488
        %s491 = scalar_lea.vmem %s211, 8
        %492 = vst.msk [vmem:[%s491] sm:$0xff] %vm359, %v490
        %494 = vrot.lane.b32.xlu0 %v490, 96
        %v495 = vpop.permute.xlu0 %494
        %s497 = scalar_lea.vmem %s218, 16
        %498 = vst.msk [vmem:[%s497] sm:$0xff] %vm359, %v495
        %s499 = scalar_lea.vmem %s205, 32
        %v500 = vld [vmem:[%s499] sm:$0xff]
        %v501 = vld [vmem:[%s499 + $0x8] sm:$0xff]
        %v502 = vld [vmem:[%s1] sm:$0xff]
        %v503 = vld [vmem:[%s1 + $0x8] sm:$0xff]
        %v504 = vld [vmem:[%s1 + $0x10] sm:$0xff]
        %v505 = vld [vmem:[%s1 + $0x18] sm:$0xff]
        %v506 = vld [vmem:[%s1 + $0x20] sm:$0xff]
        %v507 = vld [vmem:[%s1 + $0x28] sm:$0xff]
        %v508 = vld [vmem:[%s1 + $0x30] sm:$0xff]
        %v509 = vld [vmem:[%s1 + $0x38] sm:$0xff]
        %v510 = vld [vmem:[%s1 + $0x40] sm:$0xff]
        %v511 = vld [vmem:[%s1 + $0x48] sm:$0xff]
        %v512 = vld [vmem:[%s1 + $0x50] sm:$0xff]
        %v513 = vld [vmem:[%s1 + $0x58] sm:$0xff]
        %v514 = vld [vmem:[%s1 + $0x60] sm:$0xff]
        %v515 = vld [vmem:[%s1 + $0x68] sm:$0xff]
        %v516 = vld [vmem:[%s1 + $0x70] sm:$0xff]
        %v517 = vld [vmem:[%s1 + $0x78] sm:$0xff]
        %v518 = vsel %vm248, %v490, 0
        %520 = vmatprep.subr.mxu0 %v503
        %521 = vmatpush1.msra.mxu0 %v502
        %522 = vmatprep.subr.mxu0 %v505
        %523 = vmatpush1.msra.mxu0 %v504
        %524 = vmatprep.subr.mxu0 %v507
        %525 = vmatpush1.msra.mxu0 %v506
        %526 = vmatprep.subr.mxu0 %v509
        %527 = vmatpush1.msra.mxu0 %v508
        %528 = vmatprep.subr.mxu0 %v511
        %529 = vmatpush1.msra.mxu0 %v510
        %530 = vmatprep.subr.mxu0 %v513
        %531 = vmatpush1.msra.mxu0 %v512
        %532 = vmatprep.subr.mxu0 %v515
        %533 = vmatpush1.msra.mxu0 %v514
        %534 = vmatprep.subr.mxu0 %v517
        %535 = vmatpush1.msra.mxu0 %v516
        %536 = vmatprep.subr.mxu0 0.0
        %537 = vmatpush1.msra.mxu0 0.0
        %538 = vmatprep.subr.mxu0 0.0
        %539 = vmatpush1.msra.mxu0 0.0
        %540 = vmatprep.subr.mxu0 0.0
        %541 = vmatpush1.msra.mxu0 0.0
        %542 = vmatprep.subr.mxu0 0.0
        %543 = vmatpush1.msra.mxu0 0.0
        %544 = vmatprep.subr.mxu0 0.0
        %545 = vmatpush1.msra.mxu0 0.0
        %546 = vmatprep.subr.mxu0 0.0
        %547 = vmatpush1.msra.mxu0 0.0
        %548 = vmatprep.subr.mxu0 0.0
        %549 = vmatpush1.msra.mxu0 0.0
        %550 = vmatprep.subr.mxu0 0.0
        %551 = vmatpush1.msra.mxu0 0.0
        %552 = vmatprep.subr.mxu0 0.0
        %553 = vmatpush1.msra.mxu0 0.0
        %554 = vmatprep.subr.mxu0 0.0
        %555 = vmatpush1.msra.mxu0 0.0
        %556 = vmatprep.subr.mxu0 0.0
        %557 = vmatpush1.msra.mxu0 0.0
        %558 = vmatprep.subr.mxu0 0.0
        %559 = vmatpush1.msra.mxu0 0.0
        %560 = vmatprep.subr.mxu0 0.0
        %561 = vmatpush1.msra.mxu0 0.0
        %562 = vmatprep.subr.mxu0 0.0
        %563 = vmatpush1.msra.mxu0 0.0
        %564 = vmatprep.subr.mxu0 0.0
        %565 = vmatpush1.msra.mxu0 0.0
        %566 = vmatprep.subr.mxu0 0.0
        %567 = vmatpush1.msra.mxu0 0.0
        %568 = vmatprep.subr.mxu0 0.0
        %569 = vmatpush1.msra.mxu0 0.0
        %570 = vmatprep.subr.mxu0 0.0
        %571 = vmatpush1.msra.mxu0 0.0
        %572 = vmatprep.subr.mxu0 0.0
        %573 = vmatpush1.msra.mxu0 0.0
        %574 = vmatprep.subr.mxu0 0.0
        %575 = vmatpush1.msra.mxu0 0.0
        %576 = vmatprep.subr.mxu0 0.0
        %577 = vmatpush1.msra.mxu0 0.0
        %578 = vmatprep.subr.mxu0 0.0
        %579 = vmatpush1.msra.mxu0 0.0
        %580 = vmatprep.subr.mxu0 0.0
        %581 = vmatpush1.msra.mxu0 0.0
        %582 = vmatprep.subr.mxu0 0.0
        %583 = vmatpush1.msra.mxu0 0.0
        %584 = vmatprep.mubr.f32.mxu0 0.0
        %585 = vmatmul.mubr.f32.gmra.mrb[0].mxu0 %v518
        %v586 = vpop.f32.mrb[0].mxu0
        %v587 = vadd.f32 0.0, %v586
        %v588 = vpop.f32.mrb[0].mxu0
        %v589 = vadd.f32 0.0, %v588
        %590 = vdwg.mxu0
        %v591 = vadd.f32 %v500, %v587
        %v592 = vadd.f32 %v501, %v589
        %v593 = vxor.u32 %v591, 2147483648
        %v594 = vxor.u32 %v592, 2147483648
        %v595 = vmul.f32 %v593, 1.442695
        %v596 = vpow.pop %v595
        %v597 = vmul.f32 %v594, 1.442695
        %v598 = vpow.pop %v597
        %v599 = vadd.f32 %v596, 1.0
        %v600 = vadd.f32 %v598, 1.0
        %v601 = vrcp.pop %v599
        %v602 = vmul.f32 1.0, %v601
        %v603 = vrcp.pop %v600
        %v604 = vmul.f32 1.0, %v603
        %v605 = vtanh.pop %v592
        %v606 = vmul.f32 %v602, %v484
        %608 = vrot.lane.b32.xlu0 %v605, 64
        %v609 = vpop.permute.xlu0 %608
        %v611 = vmul.f32 %v602, %v609
        %613 = vrot.lane.b32.xlu0 %v611, 64
        %v614 = vpop.permute.xlu0 %613
        %v616 = vadd.f32 %v606, %v614
        %v617 = vtanh.pop %v616
        %619 = vrot.lane.b32.xlu0 %v617, 64
        %v620 = vpop.permute.xlu0 %619
        %v622 = vmul.f32 %v604, %v620
        %s623 = scalar_lea.vmem %s211, 16
        %624 = vst.msk [vmem:[%s623] sm:$0xff] %vm359, %v622
        %626 = vrot.lane.b32.xlu0 %v622, 96
        %v627 = vpop.permute.xlu0 %626
        %s629 = scalar_lea.vmem %s218, 8
        %630 = vst.msk [vmem:[%s629] sm:$0xff] %vm359, %v627
        %s631 = scalar_lea.vmem %s205, 48
        %v632 = vld [vmem:[%s631] sm:$0xff]
        %v633 = vld [vmem:[%s631 + $0x8] sm:$0xff]
        %v634 = vld [vmem:[%s1] sm:$0xff]
        %v635 = vld [vmem:[%s1 + $0x8] sm:$0xff]
        %v636 = vld [vmem:[%s1 + $0x10] sm:$0xff]
        %v637 = vld [vmem:[%s1 + $0x18] sm:$0xff]
        %v638 = vld [vmem:[%s1 + $0x20] sm:$0xff]
        %v639 = vld [vmem:[%s1 + $0x28] sm:$0xff]
        %v640 = vld [vmem:[%s1 + $0x30] sm:$0xff]
        %v641 = vld [vmem:[%s1 + $0x38] sm:$0xff]
        %v642 = vld [vmem:[%s1 + $0x40] sm:$0xff]
        %v643 = vld [vmem:[%s1 + $0x48] sm:$0xff]
        %v644 = vld [vmem:[%s1 + $0x50] sm:$0xff]
        %v645 = vld [vmem:[%s1 + $0x58] sm:$0xff]
        %v646 = vld [vmem:[%s1 + $0x60] sm:$0xff]
        %v647 = vld [vmem:[%s1 + $0x68] sm:$0xff]
        %v648 = vld [vmem:[%s1 + $0x70] sm:$0xff]
        %v649 = vld [vmem:[%s1 + $0x78] sm:$0xff]
        %v650 = vsel %vm248, %v622, 0
        %652 = vmatprep.subr.mxu0 %v635
        %653 = vmatpush1.msra.mxu0 %v634
        %654 = vmatprep.subr.mxu0 %v637
        %655 = vmatpush1.msra.mxu0 %v636
        %656 = vmatprep.subr.mxu0 %v639
        %657 = vmatpush1.msra.mxu0 %v638
        %658 = vmatprep.subr.mxu0 %v641
        %659 = vmatpush1.msra.mxu0 %v640
        %660 = vmatprep.subr.mxu0 %v643
        %661 = vmatpush1.msra.mxu0 %v642
        %662 = vmatprep.subr.mxu0 %v645
        %663 = vmatpush1.msra.mxu0 %v644
        %664 = vmatprep.subr.mxu0 %v647
        %665 = vmatpush1.msra.mxu0 %v646
        %666 = vmatprep.subr.mxu0 %v649
        %667 = vmatpush1.msra.mxu0 %v648
        %668 = vmatprep.subr.mxu0 0.0
        %669 = vmatpush1.msra.mxu0 0.0
        %670 = vmatprep.subr.mxu0 0.0
        %671 = vmatpush1.msra.mxu0 0.0
        %672 = vmatprep.subr.mxu0 0.0
        %673 = vmatpush1.msra.mxu0 0.0
        %674 = vmatprep.subr.mxu0 0.0
        %675 = vmatpush1.msra.mxu0 0.0
        %676 = vmatprep.subr.mxu0 0.0
        %677 = vmatpush1.msra.mxu0 0.0
        %678 = vmatprep.subr.mxu0 0.0
        %679 = vmatpush1.msra.mxu0 0.0
        %680 = vmatprep.subr.mxu0 0.0
        %681 = vmatpush1.msra.mxu0 0.0
        %682 = vmatprep.subr.mxu0 0.0
        %683 = vmatpush1.msra.mxu0 0.0
        %684 = vmatprep.subr.mxu0 0.0
        %685 = vmatpush1.msra.mxu0 0.0
        %686 = vmatprep.subr.mxu0 0.0
        %687 = vmatpush1.msra.mxu0 0.0
        %688 = vmatprep.subr.mxu0 0.0
        %689 = vmatpush1.msra.mxu0 0.0
        %690 = vmatprep.subr.mxu0 0.0
        %691 = vmatpush1.msra.mxu0 0.0
        %692 = vmatprep.subr.mxu0 0.0
        %693 = vmatpush1.msra.mxu0 0.0
        %694 = vmatprep.subr.mxu0 0.0
        %695 = vmatpush1.msra.mxu0 0.0
        %696 = vmatprep.subr.mxu0 0.0
        %697 = vmatpush1.msra.mxu0 0.0
        %698 = vmatprep.subr.mxu0 0.0
        %699 = vmatpush1.msra.mxu0 0.0
        %700 = vmatprep.subr.mxu0 0.0
        %701 = vmatpush1.msra.mxu0 0.0
        %702 = vmatprep.subr.mxu0 0.0
        %703 = vmatpush1.msra.mxu0 0.0
        %704 = vmatprep.subr.mxu0 0.0
        %705 = vmatpush1.msra.mxu0 0.0
        %706 = vmatprep.subr.mxu0 0.0
        %707 = vmatpush1.msra.mxu0 0.0
        %708 = vmatprep.subr.mxu0 0.0
        %709 = vmatpush1.msra.mxu0 0.0
        %710 = vmatprep.subr.mxu0 0.0
        %711 = vmatpush1.msra.mxu0 0.0
        %712 = vmatprep.subr.mxu0 0.0
        %713 = vmatpush1.msra.mxu0 0.0
        %714 = vmatprep.subr.mxu0 0.0
        %715 = vmatpush1.msra.mxu0 0.0
        %716 = vmatprep.mubr.f32.mxu0 0.0
        %717 = vmatmul.mubr.f32.gmra.mrb[0].mxu0 %v650
        %v718 = vpop.f32.mrb[0].mxu0
        %v719 = vadd.f32 0.0, %v718
        %v720 = vpop.f32.mrb[0].mxu0
        %v721 = vadd.f32 0.0, %v720
        %722 = vdwg.mxu0
        %v723 = vadd.f32 %v632, %v719
        %v724 = vadd.f32 %v633, %v721
        %v725 = vxor.u32 %v723, 2147483648
        %v726 = vxor.u32 %v724, 2147483648
        %v727 = vmul.f32 %v725, 1.442695
        %v728 = vpow.pop %v727
        %v729 = vmul.f32 %v726, 1.442695
        %v730 = vpow.pop %v729
        %v731 = vadd.f32 %v728, 1.0
        %v732 = vadd.f32 %v730, 1.0
        %v733 = vrcp.pop %v731
        %v734 = vmul.f32 1.0, %v733
        %v735 = vrcp.pop %v732
        %v736 = vmul.f32 1.0, %v735
        %v737 = vtanh.pop %v724
        %v738 = vmul.f32 %v734, %v616
        %740 = vrot.lane.b32.xlu0 %v737, 64
        %v741 = vpop.permute.xlu0 %740
        %v743 = vmul.f32 %v734, %v741
        %745 = vrot.lane.b32.xlu0 %v743, 64
        %v746 = vpop.permute.xlu0 %745
        %v748 = vadd.f32 %v738, %v746
        %v749 = vtanh.pop %v748
        %751 = vrot.lane.b32.xlu0 %v749, 64
        %v752 = vpop.permute.xlu0 %751
        %v754 = vmul.f32 %v736, %v752
        %s755 = scalar_lea.vmem %s211, 24
        %756 = vst.msk [vmem:[%s755] sm:$0xff] %vm359, %v754
        %758 = vrot.lane.b32.xlu0 %v754, 96
        %v759 = vpop.permute.xlu0 %758
        %761 = vst.msk [vmem:[%s218] sm:$0xff] %vm359, %v759
        %762 = vst.msk [vmem:[#allocation2] sm:$0xff] %vm248, %v754
        %764 = vrot.lane.b32.xlu0 %v748, 64
        %v765 = vpop.permute.xlu0 %764
        %767 = vst.msk [vmem:[#allocation3] sm:$0xff] %vm248, %v765
        %p768 = scmp.eq.s32.totalorder %s17, 1
        // Predicated region
        $region33: #{bilstm_forward.2} parent=27 // pred_check
          %p769 = pneg %p768
        $region34: #{bilstm_forward.2} parent=27 // pred_check_branch
          %771 = sbr.rel (%p769) target = $region36
        $region35: #{bilstm_forward.2} parent=27 // pred_region
          %772 = vst.msk [vmem:[#allocation4] sm:$0xff] %vm248, %v754
        $region36: #{bilstm_forward.2} parent=27 // pred_fallthru
          _
        %s773 = smul.u32 4, %s17
        %p774 = scmp.lt.s32.totalorder %s773, 7
        %s775 = scalar_select %p774, %s773, 7
        %s776 = smul.addr %s775, 8
        %s777 = scalar_lea.vmem %s2, %s776
        %s778 = ssub.s32 1, %s17
        %s779 = smul.u32 4, %s778
        %p780 = scmp.lt.s32.totalorder %s779, 7
        %s781 = scalar_select %p780, %s779, 7
        %s782 = smul.addr %s781, 8
        %s783 = scalar_lea.vmem %s3, %s782
        // Predicated region
        $region37: #{bilstm_forward.2} parent=27 // pred_check
          %p784 = pneg %p82
        $region38: #{bilstm_forward.2} parent=27 // pred_check_branch
          %786 = sbr.rel (%p784) target = $region40
        $region39: #{bilstm_forward.2} parent=27 // pred_region
          %s787 = smul.u32 4, %s17
        $region40: #{bilstm_forward.2} parent=27 // pred_fallthru
          _
        // Predicated region
        $region41: #{bilstm_forward.2} parent=27 // pred_check
          %p788 = pneg %p110
        $region42: #{bilstm_forward.2} parent=27 // pred_check_branch
          %790 = sbr.rel (%p788) target = $region44
        $region43: #{bilstm_forward.2} parent=27 // pred_region
          %s791 = ssub.s32 1, %s17
          %s792 = smul.u32 4, %s791
        $region44: #{bilstm_forward.2} parent=27 // pred_fallthru
          _
        // Predicated region
        $region45: #{bilstm_forward.2} parent=27 // pred_check
          %p793 = pneg %p131
        $region46: #{bilstm_forward.2} parent=27 // pred_check_branch
          %795 = sbr.rel (%p793) target = $region48
        $region47: #{bilstm_forward.2} parent=27 // pred_region
          %s797 = ssub.s32 128, 128
          %798 = vsyncadd [#allocation5], %s797
          %s800 = sshll.u32 [#allocation4], 4
          %s801 = int_to_ptr.vmem [resolvable:$true] %s800
          %803 = dma.vmem_to_hbm [thread:$0]  %s801, 128, %s4, [#allocation5]
        $region48: #{bilstm_forward.2} parent=27 // pred_fallthru
          _
        // Predicated region
        $region49: #{bilstm_forward.2} parent=27 // pred_check
          %p804 = pneg %p131
        $region50: #{bilstm_forward.2} parent=27 // pred_check_branch
          %806 = sbr.rel (%p804) target = $region52
        $region51: #{bilstm_forward.2} parent=27 // pred_region
          %807 = dma.done [#allocation5], 128
        $region52: #{bilstm_forward.2} parent=27 // pred_fallthru
          _
      $region28: #{bilstm_forward.2} parent=5 // pred_fallthru
        _
      %p808 = scmp.le.s32.totalorder 2, %s12
      // Predicated region
      $region53: #{bilstm_forward.2} parent=5 // pred_check
        %p809 = pneg %p808
      $region54: #{bilstm_forward.2} parent=5 // pred_check_branch
        %811 = sbr.rel (%p809) target = $region56
      $region55: #{bilstm_forward.2} parent=5 // pred_region
        %s812 = ssub.s32 %s12, 2
        // Predicated region
        $region57: #{bilstm_forward.2} parent=55 // pred_check
          %p813 = pneg %p88
        $region58: #{bilstm_forward.2} parent=55 // pred_check_branch
          %815 = sbr.rel (%p813) target = $region60
        $region59: #{bilstm_forward.2} parent=55 // pred_region
          %s816 = smul.u32 4, %s18
          %p817 = scmp.lt.s32.totalorder %s816, 7
          %s818 = scalar_select %p817, %s816, 7
          %s819 = smul.addr %s818, 8
          %s820 = scalar_lea.vmem %s2, %s819
        $region60: #{bilstm_forward.2} parent=55 // pred_fallthru
          _
        // Predicated region
        $region61: #{bilstm_forward.2} parent=55 // pred_check
          %p821 = pneg %p116
        $region62: #{bilstm_forward.2} parent=55 // pred_check_branch
          %823 = sbr.rel (%p821) target = $region64
        $region63: #{bilstm_forward.2} parent=55 // pred_region
          %s824 = ssub.s32 1, %s18
          %s825 = smul.u32 4, %s824
          %p826 = scmp.lt.s32.totalorder %s825, 7
          %s827 = scalar_select %p826, %s825, 7
          %s828 = smul.addr %s827, 8
          %s829 = scalar_lea.vmem %s3, %s828
        $region64: #{bilstm_forward.2} parent=55 // pred_fallthru
          _
      $region56: #{bilstm_forward.2} parent=5 // pred_fallthru
        _
    $region6: #{bilstm_forward.2} parent=1 // loop_footer
      %s16 = sadd.s32 1, %s12
    $region7: #{bilstm_forward.2} parent=1 // loop_footer_branch
      %11 = sbr.rel target = $region3
    $region8: #{bilstm_forward.2} parent=1 // loop_exit
      _
    %830 = vsyncpa [#allocation5], 1
    %s831 = scalar_lea.sflag [#allocation5], 1
    %832 = vsyncpa %s831, 1

// kernel: bilstm_forward.3
$region0: #{bilstm_forward.3}
  #allocation0 [shape = 'u32[]', space=smem, size = 0x4, offset = 0x4, fixed_abs, tag = 'smem constant byte address 0x4 - core index']
  #allocation1 [shape = 'u32[144,128]{1,0:T(1,128)}', space=vmem, size = 0x12000, scoped, tag = 'internal scratch']
  #allocation2 [shape = 'f32[8,64]{1,0:T(8,128)}', space=vmem, size = 0x1000, scoped, tag = 'scratch operand']
  #allocation3 [shape = 'f32[8,64]{1,0:T(8,128)}', space=vmem, size = 0x1000, scoped, tag = 'scratch operand']
  %s0 = inlined_call_operand.vmem [shape: f32[8,8,256], index: 0, kind: input, shape index: {}]
  %s1 = inlined_call_operand.vmem [shape: f32[64,256], index: 1, kind: input, shape index: {}]
  %s2 = inlined_call_operand.hbm [shape: f32[8,8,32], index: 2, kind: output, shape index: {0}]
  %s3 = inlined_call_operand.hbm [shape: f32[8,8,32], index: 3, kind: output, shape index: {1}]
  %s4 = inlined_call_operand.vmem [shape: f32[8,64], index: 4, kind: output, shape index: {2}]
  %5 = xla_tuple %s2, %s3, %s4
  %s6 = sld [smem:[#allocation0]]
  $region65: #{bilstm_forward.3} parent=0
    _
  %s8 = ssub.s32 1, %s6
  %s9 = scalar_select 0, %s8, %s6
  $region1: #{bilstm_forward.3} parent=0
    #allocation4 [shape = 'u8[32768]{0}', space=vmem, size = 0x8000, scoped, tag = 'output window, operand 0']
    #allocation5 [shape = 's32[2]{0}', space=sflag, size = 0x8, scoped, tag = 'scoped memory for bilstm_forward.3']
    #allocation6 [shape = 'u8[32768]{0}', space=vmem, size = 0x8000, scoped, tag = 'output window, operand 1']
    #allocation7 [shape = 's32[2]{0}', space=sflag, size = 0x8, scoped, tag = 'scoped memory for bilstm_forward.3']
    %10 = vsyncpa [#allocation5], 0
    %s11 = scalar_lea.sflag [#allocation5], 1
    %12 = vsyncpa %s11, 0
    %13 = vsyncpa [#allocation7], 0
    %s14 = scalar_lea.sflag [#allocation7], 1
    %15 = vsyncpa %s14, 0
    loop: start=0, step=1, limit=4
    $region2: #{bilstm_forward.3} parent=1 // loop_pre_header
      _
    $region3: #{bilstm_forward.3} parent=1 // loop_header
      %s17 = sphi 0, %s21
      %p18 = scmp.ge.s32.totalorder %s17, 4
      %s27 = sphi 0, %s29
      %s30 = sphi 0, %s27
      %s31 = sphi 0, %s30
      %s47 = sphi 0, %s31
      %s51 = sphi 0, %s51
      %s53 = sphi 0, %s51
      %s54 = sphi 0, %s53
      %s68 = sphi 0, %s54
      %s74 = sphi 0, %s76
      %s77 = sphi 0, %s74
      %s78 = sphi 0, %s77
      %s94 = sphi 0, %s78
      %s102 = sphi 0, %s104
      %s105 = sphi 0, %s102
      %s106 = sphi 0, %s105
      %s122 = sphi 0, %s106
      %s126 = sphi 0, %s126
      %s128 = sphi 0, %s126
      %s129 = sphi 0, %s128
      %s143 = sphi 0, %s129
    $region4: #{bilstm_forward.3} parent=1 // loop_header_branch
      %20 = sbr.rel (%p18) target = $region8
    $region5: #{bilstm_forward.3} parent=1 // loop_body
      %s22 = ssub.s32 %s17, 1
      %s23 = ssub.s32 %s17, 2
      %s24 = sadd.s32 %s17, 1
      %s25 = ssub.s32 %s17, %s24
      %p26 = scmp.eq.s32.totalorder %s25, 0
      %s28 = sadd.s32 %s27, 1
      %s29 = scalar_select %p26, %s27, %s28
      %p32 = pneg %p26
      %p33 = scmp.eq.s32.totalorder %s17, 1
      %p34 = por %p32, %p33
      %p35 = scmp.ne.s32.totalorder %s27, %s30
      %p36 = scmp.eq.s32.totalorder %s17, 0
      %p37 = por %p35, %p36
      %p38 = scmp.ne.s32.totalorder %s27, %s30
      %p39 = scmp.eq.s32.totalorder %s22, 1
      %p40 = por %p38, %p39
      %p41 = scmp.ne.s32.totalorder %s30, %s31
      %p42 = scmp.eq.s32.totalorder %s22, 0
      %p43 = por %p41, %p42
      %p44 = scmp.ne.s32.totalorder %s30, %s31
      %p45 = scmp.eq.s32.totalorder %s23, 1
      %p46 = por %p44, %p45
      %p48 = scmp.ne.s32.totalorder %s31, %s47
      %p49 = scmp.eq.s32.totalorder %s23, 0
      %p50 = por %p48, %p49
      %s52 = sadd.s32 %s51, 1
      %p55 = scmp.eq.s32.totalorder %s17, 1
      %p56 = scmp.ne.s32.totalorder %s51, %s53
      %p57 = scmp.eq.s32.totalorder %s17, 0
      %p58 = por %p56, %p57
      %p59 = scmp.ne.s32.totalorder %s51, %s53
      %p60 = scmp.eq.s32.totalorder %s22, 1
      %p61 = por %p59, %p60
      %p62 = scmp.ne.s32.totalorder %s53, %s54
      %p63 = scmp.eq.s32.totalorder %s22, 0
      %p64 = por %p62, %p63
      %p65 = scmp.ne.s32.totalorder %s53, %s54
      %p66 = scmp.eq.s32.totalorder %s23, 1
      %p67 = por %p65, %p66
      %p69 = scmp.ne.s32.totalorder %s54, %s68
      %p70 = scmp.eq.s32.totalorder %s23, 0
      %p71 = por %p69, %p70
      %s72 = ssub.s32 %s17, %s24
      %p73 = scmp.eq.s32.totalorder %s72, 0
      %s75 = sadd.s32 %s74, 1
      %s76 = scalar_select %p73, %s74, %s75
      %p79 = pneg %p73
      %p80 = scmp.eq.s32.totalorder %s17, 1
      %p81 = por %p79, %p80
      %p82 = scmp.ne.s32.totalorder %s74, %s77
      %p83 = scmp.eq.s32.totalorder %s17, 0
      %p84 = por %p82, %p83
      %p85 = scmp.ne.s32.totalorder %s74, %s77
      %p86 = scmp.eq.s32.totalorder %s22, 1
      %p87 = por %p85, %p86
      %p88 = scmp.ne.s32.totalorder %s77, %s78
      %p89 = scmp.eq.s32.totalorder %s22, 0
      %p90 = por %p88, %p89
      %p91 = scmp.ne.s32.totalorder %s77, %s78
      %p92 = scmp.eq.s32.totalorder %s23, 1
      %p93 = por %p91, %p92
      %p95 = scmp.ne.s32.totalorder %s78, %s94
      %p96 = scmp.eq.s32.totalorder %s23, 0
      %p97 = por %p95, %p96
      %s98 = ssub.s32 1, %s17
      %s99 = ssub.s32 1, %s24
      %s100 = ssub.s32 %s98, %s99
      %p101 = scmp.eq.s32.totalorder %s100, 0
      %s103 = sadd.s32 %s102, 1
      %s104 = scalar_select %p101, %s102, %s103
      %p107 = pneg %p101
      %p108 = scmp.eq.s32.totalorder %s17, 1
      %p109 = por %p107, %p108
      %p110 = scmp.ne.s32.totalorder %s102, %s105
      %p111 = scmp.eq.s32.totalorder %s17, 0
      %p112 = por %p110, %p111
      %p113 = scmp.ne.s32.totalorder %s102, %s105
      %p114 = scmp.eq.s32.totalorder %s22, 1
      %p115 = por %p113, %p114
      %p116 = scmp.ne.s32.totalorder %s105, %s106
      %p117 = scmp.eq.s32.totalorder %s22, 0
      %p118 = por %p116, %p117
      %p119 = scmp.ne.s32.totalorder %s105, %s106
      %p120 = scmp.eq.s32.totalorder %s23, 1
      %p121 = por %p119, %p120
      %p123 = scmp.ne.s32.totalorder %s106, %s122
      %p124 = scmp.eq.s32.totalorder %s23, 0
      %p125 = por %p123, %p124
      %s127 = sadd.s32 %s126, 1
      %p130 = scmp.eq.s32.totalorder %s17, 1
      %p131 = scmp.ne.s32.totalorder %s126, %s128
      %p132 = scmp.eq.s32.totalorder %s17, 0
      %p133 = por %p131, %p132
      %p134 = scmp.ne.s32.totalorder %s126, %s128
      %p135 = scmp.eq.s32.totalorder %s22, 1
      %p136 = por %p134, %p135
      %p137 = scmp.ne.s32.totalorder %s128, %s129
      %p138 = scmp.eq.s32.totalorder %s22, 0
      %p139 = por %p137, %p138
      %p140 = scmp.ne.s32.totalorder %s128, %s129
      %p141 = scmp.eq.s32.totalorder %s23, 1
      %p142 = por %p140, %p141
      %p144 = scmp.ne.s32.totalorder %s129, %s143
      %p145 = scmp.eq.s32.totalorder %s23, 0
      %p146 = por %p144, %p145
      %p147 = scmp.le.s32.totalorder 1, %s17
      %p148 = scmp.lt.s32.totalorder %s17, 3
      %p149 = pnand %p147, %p148
      %p150 = pneg %p149
      // Predicated region
      $region9: #{bilstm_forward.3} parent=5 // pred_check
        _
      $region10: #{bilstm_forward.3} parent=5 // pred_check_branch
        %152 = sbr.rel (%p149) target = $region12
      $region11: #{bilstm_forward.3} parent=5 // pred_region
        %s153 = ssub.s32 %s17, 1
        // Predicated region
        $region13: #{bilstm_forward.3} parent=11 // pred_check
          %p154 = pneg %p64
        $region14: #{bilstm_forward.3} parent=11 // pred_check_branch
          %156 = sbr.rel (%p154) target = $region16
        $region15: #{bilstm_forward.3} parent=11 // pred_region
          _
        $region16: #{bilstm_forward.3} parent=11 // pred_fallthru
          _
      $region12: #{bilstm_forward.3} parent=5 // pred_fallthru
        _
      %p157 = scmp.lt.s32.totalorder %s17, 2
      // Predicated region
      $region17: #{bilstm_forward.3} parent=5 // pred_check
        %p158 = pneg %p157
      $region18: #{bilstm_forward.3} parent=5 // pred_check_branch
        %160 = sbr.rel (%p158) target = $region20
      $region19: #{bilstm_forward.3} parent=5 // pred_region
        // Predicated region
        $region21: #{bilstm_forward.3} parent=19 // pred_check
          %p161 = pneg %p37
        $region22: #{bilstm_forward.3} parent=19 // pred_check_branch
          %163 = sbr.rel (%p161) target = $region24
        $region23: #{bilstm_forward.3} parent=19 // pred_region
          %s164 = smul.u32 4, %s17
          %p165 = scmp.lt.s32.totalorder %s164, 7
          %s166 = scalar_select %p165, %s164, 7
          %s167 = smul.addr %s166, 2
          %s168 = smul.addr %s167, 8
          %s169 = scalar_lea.vmem %s0, %s168
          %s170 = smul.u32 4, %s17
        $region24: #{bilstm_forward.3} parent=19 // pred_fallthru
          _
      $region20: #{bilstm_forward.3} parent=5 // pred_fallthru
        _
      %p171 = scmp.le.s32.totalorder 1, %s17
      %p172 = scmp.lt.s32.totalorder %s17, 3
      %p173 = pnand %p171, %p172
      %p174 = pneg %p173
      // Predicated region
      $region25: #{bilstm_forward.3} parent=5 // pred_check
        _
      $region26: #{bilstm_forward.3} parent=5 // pred_check_branch
        %176 = sbr.rel (%p173) target = $region28
      $region27: #{bilstm_forward.3} parent=5 // pred_region
        %s177 = ssub.s32 %s17, 1
        %s178 = smul.u32 4, %s22
        %p179 = scmp.lt.s32.totalorder %s178, 7
        %s180 = scalar_select %p179, %s178, 7
        %s181 = smul.addr %s180, 2
        %s182 = smul.addr %s181, 8
        %s183 = scalar_lea.vmem %s0, %s182
        %p184 = pneg %p43
        %p185 = pneg %p40
        %p186 = pneg %p64
        %p187 = pneg %p61
        %p188 = pneg %p90
        %p189 = pneg %p87
        %s190 = sand.u32 %s77, 1
        %s191 = scalar_lea.sflag [#allocation5], %s190
        %s192 = sand.u32 %s77, 1
        %s193 = smul.addr %s192, 32
        %s194 = scalar_lea.vmem [#allocation4], %s193
        %p195 = pneg %p118
        %p196 = pneg %p115
        %s197 = sand.u32 %s105, 1
        %s198 = scalar_lea.sflag [#allocation7], %s197
        %s199 = sand.u32 %s105, 1
        %s200 = smul.addr %s199, 32
        %s201 = scalar_lea.vmem [#allocation6], %s200
        %p202 = pneg %p139
        %p203 = pneg %p136
        %s204 = smul.u32 4, %s22
        %p205 = scmp.lt.s32.totalorder %s204, 7
        %s206 = scalar_select %p205, %s204, 7
        %s207 = smul.addr %s206, 2
        %s208 = smul.addr %s207, 8
        %s209 = scalar_lea.vmem %s0, %s208
        %s210 = smul.u32 4, %s22
        %s211 = smul.u32 4, %s22
        %s212 = ssub.s32 1, %s22
        %s213 = smul.u32 4, %s212
        %p214 = scmp.eq.s32.totalorder %s22, 0
        // Predicated region
        $region29: #{bilstm_forward.3} parent=27 // pred_check
          %p215 = pneg %p214
        $region30: #{bilstm_forward.3} parent=27 // pred_check_branch
          %217 = sbr.rel (%p215) target = $region32
        $region31: #{bilstm_forward.3} parent=27 // pred_region
          %vm218 = vcmask 523264
          %219 = vst.msk [vmem:[#allocation2] sm:$0xff] %vm218, 0.0
          %220 = vst.msk [vmem:[#allocation3] sm:$0xff] %vm218, 0.0
        $region32: #{bilstm_forward.3} parent=27 // pred_fallthru
          _
        %v221 = vld [vmem:[#allocation2] sm:$0xff]
        %v222 = vld [vmem:[#allocation3] sm:$0xff]
        %v223 = vld [vmem:[%s209] sm:$0xff]
        %v224 = vld [vmem:[%s209 + $0x8] sm:$0xff]
        %v225 = vld [vmem:[%s1] sm:$0xff]
        %v226 = vld [vmem:[%s1 + $0x8] sm:$0xff]
        %v227 = vld [vmem:[%s1 + $0x10] sm:$0xff]
        %v228 = vld [vmem:[%s1 + $0x18] sm:$0xff]
        %v229 = vld [vmem:[%s1 + $0x20] sm:$0xff]
        %v230 = vld [vmem:[%s1 + $0x28] sm:$0xff]
        %v231 = vld [vmem:[%s1 + $0x30] sm:$0xff]
        %v232 = vld [vmem:[%s1 + $0x38] sm:$0xff]
        %v233 = vld [vmem:[%s1 + $0x40] sm:$0xff]
        %v234 = vld [vmem:[%s1 + $0x48] sm:$0xff]
        %v235 = vld [vmem:[%s1 + $0x50] sm:$0xff]
        %v236 = vld [vmem:[%s1 + $0x58] sm:$0xff]
        %v237 = vld [vmem:[%s1 + $0x60] sm:$0xff]
        %v238 = vld [vmem:[%s1 + $0x68] sm:$0xff]
        %v239 = vld [vmem:[%s1 + $0x70] sm:$0xff]
        %v240 = vld [vmem:[%s1 + $0x78] sm:$0xff]
        %vm241 = vcmask 523264
        %v243 = vsel %vm241, %v221, 0
        %245 = vmatprep.subr.mxu0 %v226
        %246 = vmatpush1.msra.mxu0 %v225
        %247 = vmatprep.subr.mxu0 %v228
        %248 = vmatpush1.msra.mxu0 %v227
        %249 = vmatprep.subr.mxu0 %v230
        %250 = vmatpush1.msra.mxu0 %v229
        %251 = vmatprep.subr.mxu0 %v232
        %252 = vmatpush1.msra.mxu0 %v231
        %253 = vmatprep.subr.mxu0 %v234
        %254 = vmatpush1.msra.mxu0 %v233
        %255 = vmatprep.subr.mxu0 %v236
        %256 = vmatpush1.msra.mxu0 %v235
        %257 = vmatprep.subr.mxu0 %v238
        %258 = vmatpush1.msra.mxu0 %v237
        %259 = vmatprep.subr.mxu0 %v240
        %260 = vmatpush1.msra.mxu0 %v239
        %261 = vmatprep.subr.mxu0 0.0
        %262 = vmatpush1.msra.mxu0 0.0
        %263 = vmatprep.subr.mxu0 0.0
        %264 = vmatpush1.msra.mxu0 0.0
        %265 = vmatprep.subr.mxu0 0.0
        %266 = vmatpush1.msra.mxu0 0.0
        %267 = vmatprep.subr.mxu0 0.0
        %268 = vmatpush1.msra.mxu0 0.0
        %269 = vmatprep.subr.mxu0 0.0
        %270 = vmatpush1.msra.mxu0 0.0
        %271 = vmatprep.subr.mxu0 0.0
        %272 = vmatpush1.msra.mxu0 0.0
        %273 = vmatprep.subr.mxu0 0.0
        %274 = vmatpush1.msra.mxu0 0.0
        %275 = vmatprep.subr.mxu0 0.0
        %276 = vmatpush1.msra.mxu0 0.0
        %277 = vmatprep.subr.mxu0 0.0
        %278 = vmatpush1.msra.mxu0 0.0
        %279 = vmatprep.subr.mxu0 0.0
        %280 = vmatpush1.msra.mxu0 0.0
        %281 = vmatprep.subr.mxu0 0.0
        %282 = vmatpush1.msra.mxu0 0.0
        %283 = vmatprep.subr.mxu0 0.0
        %284 = vmatpush1.msra.mxu0 0.0
        %285 = vmatprep.subr.mxu0 0.0
        %286 = vmatpush1.msra.mxu0 0.0
        %287 = vmatprep.subr.mxu0 0.0
        %288 = vmatpush1.msra.mxu0 0.0
        %289 = vmatprep.subr.mxu0 0.0
        %290 = vmatpush1.msra.mxu0 0.0
        %291 = vmatprep.subr.mxu0 0.0
        %292 = vmatpush1.msra.mxu0 0.0
        %293 = vmatprep.subr.mxu0 0.0
        %294 = vmatpush1.msra.mxu0 0.0
        %295 = vmatprep.subr.mxu0 0.0
        %296 = vmatpush1.msra.mxu0 0.0
        %297 = vmatprep.subr.mxu0 0.0
        %298 = vmatpush1.msra.mxu0 0.0
        %299 = vmatprep.subr.mxu0 0.0
        %300 = vmatpush1.msra.mxu0 0.0
        %301 = vmatprep.subr.mxu0 0.0
        %302 = vmatpush1.msra.mxu0 0.0
        %303 = vmatprep.subr.mxu0 0.0
        %304 = vmatpush1.msra.mxu0 0.0
        %305 = vmatprep.subr.mxu0 0.0
        %306 = vmatpush1.msra.mxu0 0.0
        %307 = vmatprep.subr.mxu0 0.0
        %308 = vmatpush1.msra.mxu0 0.0
        %309 = vmatprep.mubr.f32.mxu0 0.0
        %310 = vmatmul.mubr.f32.gmra.mrb[0].mxu0 %v243
        %v311 = vpop.f32.mrb[0].mxu0
        %v312 = vadd.f32 0.0, %v311
        %v313 = vpop.f32.mrb[0].mxu0
        %v314 = vadd.f32 0.0, %v313
        %315 = vdwg.mxu0
        %v316 = vadd.f32 %v223, %v312
        %v317 = vadd.f32 %v224, %v314
        %v318 = vxor.u32 %v316, 2147483648
        %v319 = vxor.u32 %v317, 2147483648
        %v320 = vmul.f32 %v318, 1.442695
        %v321 = vpow.pop %v320
        %v322 = vmul.f32 %v319, 1.442695
        %v323 = vpow.pop %v322
        %v324 = vadd.f32 %v321, 1.0
        %v325 = vadd.f32 %v323, 1.0
        %v326 = vrcp.pop %v324
        %v327 = vmul.f32 1.0, %v326
        %v328 = vrcp.pop %v325
        %v329 = vmul.f32 1.0, %v328
        %v330 = vtanh.pop %v317
        %332 = vrot.lane.b32.xlu0 %v222, 64
        %v333 = vpop.permute.xlu0 %332
        %v335 = vmul.f32 %v327, %v333
        %337 = vrot.lane.b32.xlu0 %v330, 64
        %v338 = vpop.permute.xlu0 %337
        %v340 = vmul.f32 %v327, %v338
        %342 = vrot.lane.b32.xlu0 %v340, 64
        %v343 = vpop.permute.xlu0 %342
        %v345 = vadd.f32 %v335, %v343
        %v346 = vtanh.pop %v345
        %348 = vrot.lane.b32.xlu0 %v346, 64
        %v349 = vpop.permute.xlu0 %348
        %v351 = vmul.f32 %v329, %v349
        %vm352 = vcmask 261120
        %353 = vst.msk [vmem:[%s194] sm:$0xff] %vm352, %v351
        %355 = vrot.lane.b32.xlu0 %v351, 96
        %v356 = vpop.permute.xlu0 %355
        %s358 = scalar_lea.vmem %s201, 24 [#allocation6]
        %359 = vst.msk [vmem:[%s358] sm:$0xff] %vm352, %v356
        %s360 = scalar_lea.vmem %s209, 16
        %v361 = vld [vmem:[%s360] sm:$0xff]
        %v362 = vld [vmem:[%s360 + $0x8] sm:$0xff]
        %v363 = vld [vmem:[%s1] sm:$0xff]
        %v364 = vld [vmem:[%s1 + $0x8] sm:$0xff]
        %v365 = vld [vmem:[%s1 + $0x10] sm:$0xff]
        %v366 = vld [vmem:[%s1 + $0x18] sm:$0xff]
        %v367 = vld [vmem:[%s1 + $0x20] sm:$0xff]
        %v368 = vld [vmem:[%s1 + $0x28] sm:$0xff]
        %v369 = vld [vmem:[%s1 + $0x30] sm:$0xff]
        %v370 = vld [vmem:[%s1 + $0x38] sm:$0xff]
        %v371 = vld [vmem:[%s1 + $0x40] sm:$0xff]
        %v372 = vld [vmem:[%s1 + $0x48] sm:$0xff]
        %v373 = vld [vmem:[%s1 + $0x50] sm:$0xff]
        %v374 = vld [vmem:[%s1 + $0x58] sm:$0xff]
        %v375 = vld [vmem:[%s1 + $0x60] sm:$0xff]
        %v376 = vld [vmem:[%s1 + $0x68] sm:$0xff]
        %v377 = vld [vmem:[%s1 + $0x70] sm:$0xff]
        %v378 = vld [vmem:[%s1 + $0x78] sm:$0xff]
        %v379 = vsel %vm241, %v351, 0
        %381 = vmatprep.subr.mxu0 %v364
        %382 = vmatpush1.msra.mxu0 %v363
        %383 = vmatprep.subr.mxu0 %v366
        %384 = vmatpush1.msra.mxu0 %v365
        %385 = vmatprep.subr.mxu0 %v368
        %386 = vmatpush1.msra.mxu0 %v367
        %387 = vmatprep.subr.mxu0 %v370
        %388 = vmatpush1.msra.mxu0 %v369
        %389 = vmatprep.subr.mxu0 %v372
        %390 = vmatpush1.msra.mxu0 %v371
        %391 = vmatprep.subr.mxu0 %v374
        %392 = vmatpush1.msra.mxu0 %v373
        %393 = vmatprep.subr.mxu0 %v376
        %394 = vmatpush1.msra.mxu0 %v375
        %395 = vmatprep.subr.mxu0 %v378
        %396 = vmatpush1.msra.mxu0 %v377
        %397 = vmatprep.subr.mxu0 0.0
        %398 = vmatpush1.msra.mxu0 0.0
        %399 = vmatprep.subr.mxu0 0.0
        %400 = vmatpush1.msra.mxu0 0.0
        %401 = vmatprep.subr.mxu0 0.0
        %402 = vmatpush1.msra.mxu0 0.0
        %403 = vmatprep.subr.mxu0 0.0
        %404 = vmatpush1.msra.mxu0 0.0
        %405 = vmatprep.subr.mxu0 0.0
        %406 = vmatpush1.msra.mxu0 0.0
        %407 = vmatprep.subr.mxu0 0.0
        %408 = vmatpush1.msra.mxu0 0.0
        %409 = vmatprep.subr.mxu0 0.0
        %410 = vmatpush1.msra.mxu0 0.0
        %411 = vmatprep.subr.mxu0 0.0
        %412 = vmatpush1.msra.mxu0 0.0
        %413 = vmatprep.subr.mxu0 0.0
        %414 = vmatpush1.msra.mxu0 0.0
        %415 = vmatprep.subr.mxu0 0.0
        %416 = vmatpush1.msra.mxu0 0.0
        %417 = vmatprep.subr.mxu0 0.0
        %418 = vmatpush1.msra.mxu0 0.0
        %419 = vmatprep.subr.mxu0 0.0
        %420 = vmatpush1.msra.mxu0 0.0
        %421 = vmatprep.subr.mxu0 0.0
        %422 = vmatpush1.msra.mxu0 0.0
        %423 = vmatprep.subr.mxu0 0.0
        %424 = vmatpush1.msra.mxu0 0.0
        %425 = vmatprep.subr.mxu0 0.0
        %426 = vmatpush1.msra.mxu0 0.0
        %427 = vmatprep.subr.mxu0 0.0
        %428 = vmatpush1.msra.mxu0 0.0
        %429 = vmatprep.subr.mxu0 0.0
        %430 = vmatpush1.msra.mxu0 0.0
        %431 = vmatprep.subr.mxu0 0.0
        %432 = vmatpush1.msra.mxu0 0.0
        %433 = vmatprep.subr.mxu0 0.0
        %434 = vmatpush1.msra.mxu0 0.0
        %435 = vmatprep.subr.mxu0 0.0
        %436 = vmatpush1.msra.mxu0 0.0
        %437 = vmatprep.subr.mxu0 0.0
        %438 = vmatpush1.msra.mxu0 0.0
        %439 = vmatprep.subr.mxu0 0.0
        %440 = vmatpush1.msra.mxu0 0.0
        %441 = vmatprep.subr.mxu0 0.0
        %442 = vmatpush1.msra.mxu0 0.0
        %443 = vmatprep.subr.mxu0 0.0
        %444 = vmatpush1.msra.mxu0 0.0
        %445 = vmatprep.mubr.f32.mxu0 0.0
        %446 = vmatmul.mubr.f32.gmra.mrb[0].mxu0 %v379
        %v447 = vpop.f32.mrb[0].mxu0
        %v448 = vadd.f32 0.0, %v447
        %v449 = vpop.f32.mrb[0].mxu0
        %v450 = vadd.f32 0.0, %v449
        %451 = vdwg.mxu0
        %v452 = vadd.f32 %v361, %v448
        %v453 = vadd.f32 %v362, %v450
        %v454 = vxor.u32 %v452, 2147483648
        %v455 = vxor.u32 %v453, 2147483648
        %v456 = vmul.f32 %v454, 1.442695
        %v457 = vpow.pop %v456
        %v458 = vmul.f32 %v455, 1.442695
        %v459 = vpow.pop %v458
        %v460 = vadd.f32 %v457, 1.0
        %v461 = vadd.f32 %v459, 1.0
        %v462 = vrcp.pop %v460
        %v463 = vmul.f32 1.0, %v462
        %v464 = vrcp.pop %v461
        %v465 = vmul.f32 1.0, %v464
        %v466 = vtanh.pop %v453
        %v467 = vmul.f32 %v463, %v345
        %469 = vrot.lane.b32.xlu0 %v466, 64
        %v470 = vpop.permute.xlu0 %469
        %v472 = vmul.f32 %v463, %v470
        %474 = vrot.lane.b32.xlu0 %v472, 64
        %v475 = vpop.permute.xlu0 %474
        %v477 = vadd.f32 %v467, %v475
        %v478 = vtanh.pop %v477
        %480 = vrot.lane.b32.xlu0 %v478, 64
        %v481 = vpop.permute.xlu0 %480
        %v483 = vmul.f32 %v465, %v481
        %s484 = scalar_lea.vmem %s194, 8 [#allocation4]
        %485 = vst.msk [vmem:[%s484] sm:$0xff] %vm352, %v483
        %487 = vrot.lane.b32.xlu0 %v483, 96
        %v488 = vpop.permute.xlu0 %487
        %s490 = scalar_lea.vmem %s201, 16 [#allocation6]
        %491 = vst.msk [vmem:[%s490] sm:$0xff] %vm352, %v488
        %s492 = scalar_lea.vmem %s209, 32
        %v493 = vld [vmem:[%s492] sm:$0xff]
        %v494 = vld [vmem:[%s492 + $0x8] sm:$0xff]
        %v495 = vld [vmem:[%s1] sm:$0xff]
        %v496 = vld [vmem:[%s1 + $0x8] sm:$0xff]
        %v497 = vld [vmem:[%s1 + $0x10] sm:$0xff]
        %v498 = vld [vmem:[%s1 + $0x18] sm:$0xff]
        %v499 = vld [vmem:[%s1 + $0x20] sm:$0xff]
        %v500 = vld [vmem:[%s1 + $0x28] sm:$0xff]
        %v501 = vld [vmem:[%s1 + $0x30] sm:$0xff]
        %v502 = vld [vmem:[%s1 + $0x38] sm:$0xff]
        %v503 = vld [vmem:[%s1 + $0x40] sm:$0xff]
        %v504 = vld [vmem:[%s1 + $0x48] sm:$0xff]
        %v505 = vld [vmem:[%s1 + $0x50] sm:$0xff]
        %v506 = vld [vmem:[%s1 + $0x58] sm:$0xff]
        %v507 = vld [vmem:[%s1 + $0x60] sm:$0xff]
        %v508 = vld [vmem:[%s1 + $0x68] sm:$0xff]
        %v509 = vld [vmem:[%s1 + $0x70] sm:$0xff]
        %v510 = vld [vmem:[%s1 + $0x78] sm:$0xff]
        %v511 = vsel %vm241, %v483, 0
        %513 = vmatprep.subr.mxu0 %v496
        %514 = vmatpush1.msra.mxu0 %v495
        %515 = vmatprep.subr.mxu0 %v498
        %516 = vmatpush1.msra.mxu0 %v497
        %517 = vmatprep.subr.mxu0 %v500
        %518 = vmatpush1.msra.mxu0 %v499
        %519 = vmatprep.subr.mxu0 %v502
        %520 = vmatpush1.msra.mxu0 %v501
        %521 = vmatprep.subr.mxu0 %v504
        %522 = vmatpush1.msra.mxu0 %v503
        %523 = vmatprep.subr.mxu0 %v506
        %524 = vmatpush1.msra.mxu0 %v505
        %525 = vmatprep.subr.mxu0 %v508
        %526 = vmatpush1.msra.mxu0 %v507
        %527 = vmatprep.subr.mxu0 %v510
        %528 = vmatpush1.msra.mxu0 %v509
        %529 = vmatprep.subr.mxu0 0.0
        %530 = vmatpush1.msra.mxu0 0.0
        %531 = vmatprep.subr.mxu0 0.0
        %532 = vmatpush1.msra.mxu0 0.0
        %533 = vmatprep.subr.mxu0 0.0
        %534 = vmatpush1.msra.mxu0 0.0
        %535 = vmatprep.subr.mxu0 0.0
        %536 = vmatpush1.msra.mxu0 0.0
        %537 = vmatprep.subr.mxu0 0.0
        %538 = vmatpush1.msra.mxu0 0.0
        %539 = vmatprep.subr.mxu0 0.0
        %540 = vmatpush1.msra.mxu0 0.0
        %541 = vmatprep.subr.mxu0 0.0
        %542 = vmatpush1.msra.mxu0 0.0
        %543 = vmatprep.subr.mxu0 0.0
        %544 = vmatpush1.msra.mxu0 0.0
        %545 = vmatprep.subr.mxu0 0.0
        %546 = vmatpush1.msra.mxu0 0.0
        %547 = vmatprep.subr.mxu0 0.0
        %548 = vmatpush1.msra.mxu0 0.0
        %549 = vmatprep.subr.mxu0 0.0
        %550 = vmatpush1.msra.mxu0 0.0
        %551 = vmatprep.subr.mxu0 0.0
        %552 = vmatpush1.msra.mxu0 0.0
        %553 = vmatprep.subr.mxu0 0.0
        %554 = vmatpush1.msra.mxu0 0.0
        %555 = vmatprep.subr.mxu0 0.0
        %556 = vmatpush1.msra.mxu0 0.0
        %557 = vmatprep.subr.mxu0 0.0
        %558 = vmatpush1.msra.mxu0 0.0
        %559 = vmatprep.subr.mxu0 0.0
        %560 = vmatpush1.msra.mxu0 0.0
        %561 = vmatprep.subr.mxu0 0.0
        %562 = vmatpush1.msra.mxu0 0.0
        %563 = vmatprep.subr.mxu0 0.0
        %564 = vmatpush1.msra.mxu0 0.0
        %565 = vmatprep.subr.mxu0 0.0
        %566 = vmatpush1.msra.mxu0 0.0
        %567 = vmatprep.subr.mxu0 0.0
        %568 = vmatpush1.msra.mxu0 0.0
        %569 = vmatprep.subr.mxu0 0.0
        %570 = vmatpush1.msra.mxu0 0.0
        %571 = vmatprep.subr.mxu0 0.0
        %572 = vmatpush1.msra.mxu0 0.0
        %573 = vmatprep.subr.mxu0 0.0
        %574 = vmatpush1.msra.mxu0 0.0
        %575 = vmatprep.subr.mxu0 0.0
        %576 = vmatpush1.msra.mxu0 0.0
        %577 = vmatprep.mubr.f32.mxu0 0.0
        %578 = vmatmul.mubr.f32.gmra.mrb[0].mxu0 %v511
        %v579 = vpop.f32.mrb[0].mxu0
        %v580 = vadd.f32 0.0, %v579
        %v581 = vpop.f32.mrb[0].mxu0
        %v582 = vadd.f32 0.0, %v581
        %583 = vdwg.mxu0
        %v584 = vadd.f32 %v493, %v580
        %v585 = vadd.f32 %v494, %v582
        %v586 = vxor.u32 %v584, 2147483648
        %v587 = vxor.u32 %v585, 2147483648
        %v588 = vmul.f32 %v586, 1.442695
        %v589 = vpow.pop %v588
        %v590 = vmul.f32 %v587, 1.442695
        %v591 = vpow.pop %v590
        %v592 = vadd.f32 %v589, 1.0
        %v593 = vadd.f32 %v591, 1.0
        %v594 = vrcp.pop %v592
        %v595 = vmul.f32 1.0, %v594
        %v596 = vrcp.pop %v593
        %v597 = vmul.f32 1.0, %v596
        %v598 = vtanh.pop %v585
        %v599 = vmul.f32 %v595, %v477
        %601 = vrot.lane.b32.xlu0 %v598, 64
        %v602 = vpop.permute.xlu0 %601
        %v604 = vmul.f32 %v595, %v602
        %606 = vrot.lane.b32.xlu0 %v604, 64
        %v607 = vpop.permute.xlu0 %606
        %v609 = vadd.f32 %v599, %v607
        %v610 = vtanh.pop %v609
        %612 = vrot.lane.b32.xlu0 %v610, 64
        %v613 = vpop.permute.xlu0 %612
        %v615 = vmul.f32 %v597, %v613
        %s616 = scalar_lea.vmem %s194, 16 [#allocation4]
        %617 = vst.msk [vmem:[%s616] sm:$0xff] %vm352, %v615
        %619 = vrot.lane.b32.xlu0 %v615, 96
        %v620 = vpop.permute.xlu0 %619
        %s622 = scalar_lea.vmem %s201, 8 [#allocation6]
        %623 = vst.msk [vmem:[%s622] sm:$0xff] %vm352, %v620
        %s624 = scalar_lea.vmem %s209, 48
        %v625 = vld [vmem:[%s624] sm:$0xff]
        %v626 = vld [vmem:[%s624 + $0x8] sm:$0xff]
        %v627 = vld [vmem:[%s1] sm:$0xff]
        %v628 = vld [vmem:[%s1 + $0x8] sm:$0xff]
        %v629 = vld [vmem:[%s1 + $0x10] sm:$0xff]
        %v630 = vld [vmem:[%s1 + $0x18] sm:$0xff]
        %v631 = vld [vmem:[%s1 + $0x20] sm:$0xff]
        %v632 = vld [vmem:[%s1 + $0x28] sm:$0xff]
        %v633 = vld [vmem:[%s1 + $0x30] sm:$0xff]
        %v634 = vld [vmem:[%s1 + $0x38] sm:$0xff]
        %v635 = vld [vmem:[%s1 + $0x40] sm:$0xff]
        %v636 = vld [vmem:[%s1 + $0x48] sm:$0xff]
        %v637 = vld [vmem:[%s1 + $0x50] sm:$0xff]
        %v638 = vld [vmem:[%s1 + $0x58] sm:$0xff]
        %v639 = vld [vmem:[%s1 + $0x60] sm:$0xff]
        %v640 = vld [vmem:[%s1 + $0x68] sm:$0xff]
        %v641 = vld [vmem:[%s1 + $0x70] sm:$0xff]
        %v642 = vld [vmem:[%s1 + $0x78] sm:$0xff]
        %v643 = vsel %vm241, %v615, 0
        %645 = vmatprep.subr.mxu0 %v628
        %646 = vmatpush1.msra.mxu0 %v627
        %647 = vmatprep.subr.mxu0 %v630
        %648 = vmatpush1.msra.mxu0 %v629
        %649 = vmatprep.subr.mxu0 %v632
        %650 = vmatpush1.msra.mxu0 %v631
        %651 = vmatprep.subr.mxu0 %v634
        %652 = vmatpush1.msra.mxu0 %v633
        %653 = vmatprep.subr.mxu0 %v636
        %654 = vmatpush1.msra.mxu0 %v635
        %655 = vmatprep.subr.mxu0 %v638
        %656 = vmatpush1.msra.mxu0 %v637
        %657 = vmatprep.subr.mxu0 %v640
        %658 = vmatpush1.msra.mxu0 %v639
        %659 = vmatprep.subr.mxu0 %v642
        %660 = vmatpush1.msra.mxu0 %v641
        %661 = vmatprep.subr.mxu0 0.0
        %662 = vmatpush1.msra.mxu0 0.0
        %663 = vmatprep.subr.mxu0 0.0
        %664 = vmatpush1.msra.mxu0 0.0
        %665 = vmatprep.subr.mxu0 0.0
        %666 = vmatpush1.msra.mxu0 0.0
        %667 = vmatprep.subr.mxu0 0.0
        %668 = vmatpush1.msra.mxu0 0.0
        %669 = vmatprep.subr.mxu0 0.0
        %670 = vmatpush1.msra.mxu0 0.0
        %671 = vmatprep.subr.mxu0 0.0
        %672 = vmatpush1.msra.mxu0 0.0
        %673 = vmatprep.subr.mxu0 0.0
        %674 = vmatpush1.msra.mxu0 0.0
        %675 = vmatprep.subr.mxu0 0.0
        %676 = vmatpush1.msra.mxu0 0.0
        %677 = vmatprep.subr.mxu0 0.0
        %678 = vmatpush1.msra.mxu0 0.0
        %679 = vmatprep.subr.mxu0 0.0
        %680 = vmatpush1.msra.mxu0 0.0
        %681 = vmatprep.subr.mxu0 0.0
        %682 = vmatpush1.msra.mxu0 0.0
        %683 = vmatprep.subr.mxu0 0.0
        %684 = vmatpush1.msra.mxu0 0.0
        %685 = vmatprep.subr.mxu0 0.0
        %686 = vmatpush1.msra.mxu0 0.0
        %687 = vmatprep.subr.mxu0 0.0
        %688 = vmatpush1.msra.mxu0 0.0
        %689 = vmatprep.subr.mxu0 0.0
        %690 = vmatpush1.msra.mxu0 0.0
        %691 = vmatprep.subr.mxu0 0.0
        %692 = vmatpush1.msra.mxu0 0.0
        %693 = vmatprep.subr.mxu0 0.0
        %694 = vmatpush1.msra.mxu0 0.0
        %695 = vmatprep.subr.mxu0 0.0
        %696 = vmatpush1.msra.mxu0 0.0
        %697 = vmatprep.subr.mxu0 0.0
        %698 = vmatpush1.msra.mxu0 0.0
        %699 = vmatprep.subr.mxu0 0.0
        %700 = vmatpush1.msra.mxu0 0.0
        %701 = vmatprep.subr.mxu0 0.0
        %702 = vmatpush1.msra.mxu0 0.0
        %703 = vmatprep.subr.mxu0 0.0
        %704 = vmatpush1.msra.mxu0 0.0
        %705 = vmatprep.subr.mxu0 0.0
        %706 = vmatpush1.msra.mxu0 0.0
        %707 = vmatprep.subr.mxu0 0.0
        %708 = vmatpush1.msra.mxu0 0.0
        %709 = vmatprep.mubr.f32.mxu0 0.0
        %710 = vmatmul.mubr.f32.gmra.mrb[0].mxu0 %v643
        %v711 = vpop.f32.mrb[0].mxu0
        %v712 = vadd.f32 0.0, %v711
        %v713 = vpop.f32.mrb[0].mxu0
        %v714 = vadd.f32 0.0, %v713
        %715 = vdwg.mxu0
        %v716 = vadd.f32 %v625, %v712
        %v717 = vadd.f32 %v626, %v714
        %v718 = vxor.u32 %v716, 2147483648
        %v719 = vxor.u32 %v717, 2147483648
        %v720 = vmul.f32 %v718, 1.442695
        %v721 = vpow.pop %v720
        %v722 = vmul.f32 %v719, 1.442695
        %v723 = vpow.pop %v722
        %v724 = vadd.f32 %v721, 1.0
        %v725 = vadd.f32 %v723, 1.0
        %v726 = vrcp.pop %v724
        %v727 = vmul.f32 1.0, %v726
        %v728 = vrcp.pop %v725
        %v729 = vmul.f32 1.0, %v728
        %v730 = vtanh.pop %v717
        %v731 = vmul.f32 %v727, %v609
        %733 = vrot.lane.b32.xlu0 %v730, 64
        %v734 = vpop.permute.xlu0 %733
        %v736 = vmul.f32 %v727, %v734
        %738 = vrot.lane.b32.xlu0 %v736, 64
        %v739 = vpop.permute.xlu0 %738
        %v741 = vadd.f32 %v731, %v739
        %v742 = vtanh.pop %v741
        %744 = vrot.lane.b32.xlu0 %v742, 64
        %v745 = vpop.permute.xlu0 %744
        %v747 = vmul.f32 %v729, %v745
        %s748 = scalar_lea.vmem %s194, 24 [#allocation4]
        %749 = vst.msk [vmem:[%s748] sm:$0xff] %vm352, %v747
        %751 = vrot.lane.b32.xlu0 %v747, 96
        %v752 = vpop.permute.xlu0 %751
        %754 = vst.msk [vmem:[%s201] sm:$0xff] %vm352, %v752
        %755 = vst.msk [vmem:[#allocation2] sm:$0xff] %vm241, %v747
        %757 = vrot.lane.b32.xlu0 %v741, 64
        %v758 = vpop.permute.xlu0 %757
        %760 = vst.msk [vmem:[#allocation3] sm:$0xff] %vm241, %v758
        %p761 = scmp.eq.s32.totalorder %s22, 1
        // Predicated region
        $region33: #{bilstm_forward.3} parent=27 // pred_check
          %p762 = pneg %p761
        $region34: #{bilstm_forward.3} parent=27 // pred_check_branch
          %764 = sbr.rel (%p762) target = $region36
        $region35: #{bilstm_forward.3} parent=27 // pred_region
          %765 = vst.msk [vmem:[%s4] sm:$0xff] %vm241, %v747
        $region36: #{bilstm_forward.3} parent=27 // pred_fallthru
          _
        %s766 = sand.u32 %s77, 1
        %s767 = scalar_lea.sflag [#allocation5], %s766
        %s768 = sand.u32 %s77, 1
        %s769 = smul.addr %s768, 32
        %s770 = scalar_lea.vmem [#allocation4], %s769
        %s771 = sand.u32 %s105, 1
        %s772 = scalar_lea.sflag [#allocation7], %s771
        %s773 = sand.u32 %s105, 1
        %s774 = smul.addr %s773, 32
        %s775 = scalar_lea.vmem [#allocation6], %s774
        // Predicated region
        $region37: #{bilstm_forward.3} parent=27 // pred_check
          %p776 = pneg %p87
        $region38: #{bilstm_forward.3} parent=27 // pred_check_branch
          %778 = sbr.rel (%p776) target = $region40
        $region39: #{bilstm_forward.3} parent=27 // pred_region
          %s779 = smul.u32 4, %s22
          %s781 = ssub.s32 512, 512
          %782 = vsyncadd %s767, %s781
          %s783 = smul.addr %s779, 128
          %s784 = scalar_lea.hbm %s2, %s783
          %s785 = sshll.u32 %s770, 4
          %s786 = int_to_ptr.vmem [resolvable:$true] %s785
          %791 = dma.vmem_to_hbm [thread:$0]  %s786, 512, %s784, %s767, 128, 128, 8
        $region40: #{bilstm_forward.3} parent=27 // pred_fallthru
          _
        // Predicated region
        $region41: #{bilstm_forward.3} parent=27 // pred_check
          %p792 = pneg %p115
        $region42: #{bilstm_forward.3} parent=27 // pred_check_branch
          %794 = sbr.rel (%p792) target = $region44
        $region43: #{bilstm_forward.3} parent=27 // pred_region
          %s795 = ssub.s32 1, %s22
          %s796 = smul.u32 4, %s795
          %s798 = ssub.s32 512, 512
          %799 = vsyncadd %s772, %s798
          %s800 = smul.addr %s796, 128
          %s801 = scalar_lea.hbm %s3, %s800
          %s802 = sshll.u32 %s775, 4
          %s803 = int_to_ptr.vmem [resolvable:$true] %s802
          %808 = dma.vmem_to_hbm [thread:$0]  %s803, 512, %s801, %s772, 128, 128, 8
        $region44: #{bilstm_forward.3} parent=27 // pred_fallthru
          _
        // Predicated region
        $region45: #{bilstm_forward.3} parent=27 // pred_check
          %p809 = pneg %p136
        $region46: #{bilstm_forward.3} parent=27 // pred_check_branch
          %811 = sbr.rel (%p809) target = $region48
        $region47: #{bilstm_forward.3} parent=27 // pred_region
          _
        $region48: #{bilstm_forward.3} parent=27 // pred_fallthru
          _
        // Predicated region
        $region49: #{bilstm_forward.3} parent=27 // pred_check
          %p812 = pneg %p136
        $region50: #{bilstm_forward.3} parent=27 // pred_check_branch
          %814 = sbr.rel (%p812) target = $region52
        $region51: #{bilstm_forward.3} parent=27 // pred_region
          _
        $region52: #{bilstm_forward.3} parent=27 // pred_fallthru
          _
      $region28: #{bilstm_forward.3} parent=5 // pred_fallthru
        _
      %p815 = scmp.le.s32.totalorder 2, %s17
      // Predicated region
      $region53: #{bilstm_forward.3} parent=5 // pred_check
        %p816 = pneg %p815
      $region54: #{bilstm_forward.3} parent=5 // pred_check_branch
        %818 = sbr.rel (%p816) target = $region56
      $region55: #{bilstm_forward.3} parent=5 // pred_region
        %s819 = ssub.s32 %s17, 2
        // Predicated region
        $region57: #{bilstm_forward.3} parent=55 // pred_check
          %p820 = pneg %p93
        $region58: #{bilstm_forward.3} parent=55 // pred_check_branch
          %822 = sbr.rel (%p820) target = $region60
        $region59: #{bilstm_forward.3} parent=55 // pred_region
          %s823 = sand.u32 %s78, 1
          %s824 = scalar_lea.sflag [#allocation5], %s823
          %s825 = sand.u32 %s78, 1
          %s826 = smul.addr %s825, 32
          %s827 = scalar_lea.vmem [#allocation4], %s826
          %828 = dma.done %s824, 512
        $region60: #{bilstm_forward.3} parent=55 // pred_fallthru
          _
        // Predicated region
        $region61: #{bilstm_forward.3} parent=55 // pred_check
          %p829 = pneg %p121
        $region62: #{bilstm_forward.3} parent=55 // pred_check_branch
          %831 = sbr.rel (%p829) target = $region64
        $region63: #{bilstm_forward.3} parent=55 // pred_region
          %s832 = sand.u32 %s106, 1
          %s833 = scalar_lea.sflag [#allocation7], %s832
          %s834 = sand.u32 %s106, 1
          %s835 = smul.addr %s834, 32
          %s836 = scalar_lea.vmem [#allocation6], %s835
          %837 = dma.done %s833, 512
        $region64: #{bilstm_forward.3} parent=55 // pred_fallthru
          _
      $region56: #{bilstm_forward.3} parent=5 // pred_fallthru
        _
    $region6: #{bilstm_forward.3} parent=1 // loop_footer
      %s21 = sadd.s32 1, %s17
    $region7: #{bilstm_forward.3} parent=1 // loop_footer_branch
      %16 = sbr.rel target = $region3
    $region8: #{bilstm_forward.3} parent=1 // loop_exit
      _
    %838 = vsyncpa [#allocation5], 1
    %s839 = scalar_lea.sflag [#allocation5], 1
    %840 = vsyncpa %s839, 1
    %841 = vsyncpa [#allocation7], 1
    %s842 = scalar_lea.sflag [#allocation7], 1
    %843 = vsyncpa %s842, 1

</llo_original>
